<compile_context>
chip_gen: v6e
topology: v6e:2x2x1
jax: 0.10.0
libtpu: 0.0.40
codegen_flags: <defaults>
</compile_context>

<pallas_src>
import functools

import jax
import jax.numpy as jnp
from jax.experimental import pallas as pl
from jax.experimental.pallas import tpu as pltpu


def _vmem_budget():
    """(vmem_limit_bytes, per-step tile budget) derived from the chip's physical VMEM."""
    cap = 64 * 1024 * 1024                        # conservative fallback (v7x per-TC VMEM)
    try:
        info = pltpu.get_tpu_info()
        cap = int(getattr(info, "vmem_capacity_bytes", cap)) or cap
    except Exception:
        pass
    return (cap * 7) // 8, (cap * 5) // 8         # 112/80 MiB @128 MiB, 56/40 MiB @64 MiB


def _choose_row_tile(n, bytes_per_row, budget, cap=2048):
    """Largest 8-aligned row tile whose per-step working set fits the VMEM budget."""
    tm = budget // max(bytes_per_row, 1)
    tm = min(tm, cap)
    tm = max(8, (tm // 8) * 8)
    if tm >= n:
        return n                                  # single full-extent block: always layout-legal
    return tm


# ------------------------------------------------------------------ kernels
def _rowsum_kernel(adj_ref, rs_ref):
    # Row sums of the raw adjacency for this row tile (lane-axis reduce on the XLU).
    rs_ref[...] = jnp.sum(adj_ref[...], axis=1, keepdims=True)


def _conv1_kernel(inv_rs_ref, sn1_ref, pre1_ref, adj_raw_ref, adjout_ref, h1_ref):
    # PyTorch `adj / adj.sum(1)` broadcasting: adj[i, j] / rowsum[j].
    adj_n = adj_raw_ref[...] * inv_rs_ref[...]                          # (TM, N) * (1, N)
    adjout_ref[...] = adj_n                                             # returned adjacency (f32)
    # conv1: adj @ (x @ W1_neigh) + (x @ W1_self + b1); the two small terms were hoisted.
    agg = jnp.dot(adj_n.astype(jnp.bfloat16), sn1_ref[...],
                  preferred_element_type=jnp.float32)                   # dominant bf16 MXU matmul
    h1_ref[...] = jnp.maximum(agg + pre1_ref[...], 0.0)                 # dropout == identity, ReLU


def _conv2_kernel(sn2_ref, pre2_ref, lin_w_ref, lin_b_ref, adj_ref, embed_ref, out_ref):
    # conv2 on the already-normalised adjacency streamed back from HBM.
    agg = jnp.dot(adj_ref[...].astype(jnp.bfloat16), sn2_ref[...],
                  preferred_element_type=jnp.float32)                   # dominant bf16 MXU matmul
    embed = jnp.maximum(agg + pre2_ref[...], 0.0)                       # node_embed (dropout==id)
    embed_ref[...] = embed
    logits = jnp.dot(embed, lin_w_ref[...],
                     preferred_element_type=jnp.float32) + lin_b_ref[...]
    out_ref[...] = 1.0 / (1.0 + jnp.exp(-logits))                       # exact sigmoid (parity)


# ------------------------------------------------------------------ wrapper
def graphsage_forward(x, adj_raw, params, *, row_tile=None):
    n, _ = x.shape
    h1_dim = params["w1_neigh"].shape[1]
    h2_dim = params["w2_neigh"].shape[1]
    f32 = jnp.float32

    assert row_tile is None or row_tile % 8 == 0 or row_tile == n, "row_tile must be 8-aligned"

    vmem_limit, budget = _vmem_budget()
    cparams = pltpu.CompilerParams(
        dimension_semantics=("parallel",),        # row tiles independent (v7x: split over 2 TCs)
        vmem_limit_bytes=vmem_limit,
    )

    # Per-pass dominant bytes/row: K1 read-only double-buffered adj (8N); K2 adj-in + adjout-out
    # double-buffered plus f32/bf16 temps (~24N); K3 adj-in + bf16 temp (~14N).
    tm_rs = row_tile or _choose_row_tile(n, 8 * n, budget)
    tm_c1 = row_tile or _choose_row_tile(n, 24 * n, budget)
    tm_c2 = row_tile or _choose_row_tile(n, 14 * n, budget)

    rows = lambda tm, cols: pl.BlockSpec((tm, cols), lambda i: (i, 0))   # streamed row tiles
    full = lambda shape: pl.BlockSpec(shape, lambda i: (0, 0))           # small, VMEM-resident

    # ---- pass 1: raw row sums (every tile's normalisation needs rowsum[j] for all j).
    rowsum = pl.pallas_call(
        _rowsum_kernel,
        grid=(pl.cdiv(n, tm_rs),),
        in_specs=[rows(tm_rs, n)],
        out_specs=rows(tm_rs, 1),
        out_shape=jax.ShapeDtypeStruct((n, 1), f32),
        compiler_params=cparams,
        cost_estimate=pl.CostEstimate(flops=n * n, transcendentals=0,
                                      bytes_accessed=4 * n * n + 4 * n),
    )(adj_raw)

    # O(N*H) glue hoisted out of the per-step kernel bodies (computed ONCE, not nt times).
    inv_rs = (1.0 / rowsum).reshape(1, n)                                # adj.sum(1) broadcast quirk
    s1 = jnp.dot(x, params["w1_neigh"]).astype(jnp.bfloat16)             # (N, H1) neighbour proj
    p1 = jnp.dot(x, params["w1_self"]) + params["b1"]                    # (N, H1) self term + bias

    # ---- pass 2: normalise adjacency + conv1 + ReLU.
    adj_out, h1 = pl.pallas_call(
        _conv1_kernel,
        grid=(pl.cdiv(n, tm_c1),),
        in_specs=[full((1, n)),                  # 1 / rowsum (lane-oriented)
                  full((n, h1_dim)),             # S1, bf16, resident
                  rows(tm_c1, h1_dim),           # P1, row tiled
                  rows(tm_c1, n)],               # raw adjacency, streamed
        out_specs=(rows(tm_c1, n),               # normalised adjacency (module output)
                   rows(tm_c1, h1_dim)),         # h1
        out_shape=(jax.ShapeDtypeStruct((n, n), f32),
                   jax.ShapeDtypeStruct((n, h1_dim), f32)),
        compiler_params=cparams,
        cost_estimate=pl.CostEstimate(flops=2 * n * n * h1_dim + 2 * n * n,
                                      transcendentals=0,
                                      bytes_accessed=8 * n * n),
    )(inv_rs, s1, p1, adj_raw)
    # TODO(synk): input_output_aliases={3: 0} would reuse adj_raw's HBM buffer for adj_out
    #             (footprint win for huge N) but is only safe if the caller drops adj_raw.

    s2 = jnp.dot(h1, params["w2_neigh"]).astype(jnp.bfloat16)            # (N, H2)
    p2 = jnp.dot(h1, params["w2_self"]) + params["b2"]                   # (N, H2)

    # ---- pass 3: conv2 + ReLU -> node_embed, then Linear + exact sigmoid -> out.
    node_embed, out = pl.pallas_call(
        _conv2_kernel,
        grid=(pl.cdiv(n, tm_c2),),
        in_specs=[full((n, h2_dim)),             # S2, bf16, resident
                  rows(tm_c2, h2_dim),           # P2, row tiled
                  full((h2_dim, 1)),             # lin weight (pre-transposed)
                  full((1, 1)),                  # lin bias
                  rows(tm_c2, n)],               # normalised adjacency, re-streamed
        out_specs=(rows(tm_c2, h2_dim),
                   rows(tm_c2, 1)),
        out_shape=(jax.ShapeDtypeStruct((n, h2_dim), f32),
                   jax.ShapeDtypeStruct((n, 1), f32)),
        compiler_params=cparams,
        cost_estimate=pl.CostEstimate(flops=2 * n * n * h2_dim + 2 * n * h2_dim,
                                      transcendentals=n,
                                      bytes_accessed=4 * n * n),
    )(s2, p2, params["lin_w"], params["lin_b"], adj_out)

    return out, node_embed, adj_out


def init_params(key, in_channels, h1, h2):
    ks = jax.random.split(key, 6)

    def u(k, shape, fan_in):
        bound = 1.0 / jnp.sqrt(fan_in)
        return jax.random.uniform(k, shape, jnp.float32, -bound, bound)

    return {
        # conv1: in_channels -> h1
        "w1_neigh": u(ks[0], (in_channels, h1), in_channels),
        "w1_self":  u(ks[1], (in_channels, h1), in_channels),
        "b1":       jnp.zeros((1, h1), jnp.float32),
        # conv2: h1 -> h2
        "w2_neigh": u(ks[2], (h1, h2), h1),
        "w2_self":  u(ks[3], (h1, h2), h1),
        "b2":       jnp.zeros((1, h2), jnp.float32),
        # lin: h2 -> 1 (stored pre-transposed as (h2, 1))
        "lin_w":    u(ks[4], (h2, 1), h2),
        "lin_b":    u(ks[5], (1, 1), h2),
    }


if __name__ == "__main__":
    key = jax.random.PRNGKey(0)
    k_x, k_adj, k_p = jax.random.split(key, 3)

    # Small demo shapes; N deliberately NOT a multiple of the row tile to exercise the
    # cdiv / ragged-last-block path (row-wise independent kernels -> boundary rows are masked).
    N, IN_CH, H1, H2 = 240, 4, 32, 16

    x = jax.random.normal(k_x, (N, IN_CH), jnp.float32)
    # Positive edge weights -> well-conditioned row normalisation (graph-like input).
    adj_raw = jax.random.uniform(k_adj, (N, N), jnp.float32, minval=0.05, maxval=1.0)
    params = init_params(k_p, IN_CH, H1, H2)

    # row_tile=64 forces a 4-step grid (last tile ragged) so the streamed path is exercised.
    fwd = jax.jit(functools.partial(graphsage_forward, row_tile=64))
    out, node_embed, adj = fwd(x, adj_raw, params)
    jax.block_until_ready((out, node_embed, adj))

    # ---- pure-JAX f32 reference (same broadcasting quirk as the PyTorch module) ----
    adj_ref = adj_raw / jnp.sum(adj_raw, axis=1)
    h1_ref = jnp.maximum(adj_ref @ (x @ params["w1_neigh"])
                         + x @ params["w1_self"] + params["b1"], 0.0)
    emb_ref = jnp.maximum(adj_ref @ (h1_ref @ params["w2_neigh"])
                          + h1_ref @ params["w2_self"] + params["b2"], 0.0)
    out_ref = jax.nn.sigmoid(emb_ref @ params["lin_w"] + params["lin_b"])

    assert out.shape == (N, 1) and node_embed.shape == (N, H2) and adj.shape == (N, N)
    assert bool(jnp.all(jnp.isfinite(out))) and bool(jnp.all(jnp.isfinite(node_embed)))
    assert bool(jnp.allclose(adj, adj_ref, atol=1e-5, rtol=1e-5))
    # bf16 adjacency matmuls -> loose tolerance vs the pure-f32 reference.
    assert bool(jnp.allclose(node_embed, emb_ref, atol=3e-2, rtol=3e-2))
    assert bool(jnp.allclose(out, out_ref, atol=3e-2, rtol=3e-2))

    print("KERNEL_OK")
</pallas_src>

<mosaic_0001>
module attributes {stable_mosaic.version = 11 : i64} {
  func.func @_rowsum_kernel(%arg0: i32, %arg1: memref<64x240xf32, #tpu.memory_space<vmem>>, %arg2: memref<64x1xf32, #tpu.memory_space<vmem>>) attributes {dimension_semantics = [#tpu.dimension_semantics<parallel>], iteration_bounds = array<i64: 4>, scalar_prefetch = 0 : i64, scratch_operands = 0 : i64, tpu.core_type = #tpu.core_type<tc>, window_params = [{transform_indices = @transform_0, window_bounds = array<i64: 64, 240>}, {transform_indices = @transform_1, window_bounds = array<i64: 64, 1>}]} {
    %c0 = arith.constant 0 : index
    %c0_0 = arith.constant 0 : index
    %0 = vector.load %arg1[%c0, %c0_0] : memref<64x240xf32, #tpu.memory_space<vmem>>, vector<64x240xf32>
    %cst = arith.constant dense<0.000000e+00> : vector<64xf32>
    %1 = vector.multi_reduction <add>, %0, %cst [1] : vector<64x240xf32> to vector<64xf32>
    %2 = vector.shape_cast %1 : vector<64xf32> to vector<64x1xf32>
    %c0_1 = arith.constant 0 : index
    %c0_2 = arith.constant 0 : index
    %3 = vector.load %arg2[%c0_1, %c0_2] : memref<64x1xf32, #tpu.memory_space<vmem>>, vector<64x1xf32>
    tpu.vector_store %arg2[%c0_1, %c0_2], %2 {strides = array<i32>} : memref<64x1xf32, #tpu.memory_space<vmem>>, vector<64x1xf32>,
    return
  }
  func.func @transform_0(%arg0: i32) -> (i32, i32) {
    %c0_i32 = arith.constant 0 : i32
    %c0_i32_0 = arith.constant 0 : i32
    return %arg0, %c0_i32 : i32, i32
  }
  func.func @transform_1(%arg0: i32) -> (i32, i32) {
    %c0_i32 = arith.constant 0 : i32
    %c0_i32_0 = arith.constant 0 : i32
    return %arg0, %c0_i32 : i32, i32
  }
}

module attributes {stable_mosaic.version = 11 : i64} {
  func.func @_conv1_kernel(%arg0: i32, %arg1: memref<1x240xf32, #tpu.memory_space<vmem>>, %arg2: memref<240x32xbf16, #tpu.memory_space<vmem>>, %arg3: memref<64x32xf32, #tpu.memory_space<vmem>>, %arg4: memref<64x240xf32, #tpu.memory_space<vmem>>, %arg5: memref<64x240xf32, #tpu.memory_space<vmem>>, %arg6: memref<64x32xf32, #tpu.memory_space<vmem>>) attributes {dimension_semantics = [#tpu.dimension_semantics<parallel>], iteration_bounds = array<i64: 4>, scalar_prefetch = 0 : i64, scratch_operands = 0 : i64, tpu.core_type = #tpu.core_type<tc>, window_params = [{pipeline_mode = #tpu.pipeline_mode<synchronous>, transform_indices = @transform_0, window_bounds = array<i64: 1, 240>}, {pipeline_mode = #tpu.pipeline_mode<synchronous>, transform_indices = @transform_1, window_bounds = array<i64: 240, 32>}, {transform_indices = @transform_2, window_bounds = array<i64: 64, 32>}, {transform_indices = @transform_3, window_bounds = array<i64: 64, 240>}, {transform_indices = @transform_4, window_bounds = array<i64: 64, 240>}, {transform_indices = @transform_5, window_bounds = array<i64: 64, 32>}]} {
    %c0 = arith.constant 0 : index
    %c0_0 = arith.constant 0 : index
    %0 = vector.load %arg4[%c0, %c0_0] : memref<64x240xf32, #tpu.memory_space<vmem>>, vector<64x240xf32>
    %c0_1 = arith.constant 0 : index
    %c0_2 = arith.constant 0 : index
    %1 = vector.load %arg1[%c0_1, %c0_2] : memref<1x240xf32, #tpu.memory_space<vmem>>, vector<1x240xf32>
    %2 = vector.broadcast %1 : vector<1x240xf32> to vector<64x240xf32>
    %3 = arith.mulf %0, %2 : vector<64x240xf32>
    %c0_3 = arith.constant 0 : index
    %c0_4 = arith.constant 0 : index
    %4 = vector.load %arg5[%c0_3, %c0_4] : memref<64x240xf32, #tpu.memory_space<vmem>>, vector<64x240xf32>
    tpu.vector_store %arg5[%c0_3, %c0_4], %3 {strides = array<i32>} : memref<64x240xf32, #tpu.memory_space<vmem>>, vector<64x240xf32>,
    %5 = arith.truncf %3 : vector<64x240xf32> to vector<64x240xbf16>
    %c0_5 = arith.constant 0 : index
    %c0_6 = arith.constant 0 : index
    %6 = vector.load %arg2[%c0_5, %c0_6] : memref<240x32xbf16, #tpu.memory_space<vmem>>, vector<240x32xbf16>
    %cst = arith.constant dense<0.000000e+00> : vector<64x32xf32>
    %7 = tpu.matmul %5, %6, %cst {dimension_numbers = #tpu.dot_dimension_numbers<[1], [0], [0], [1], [0, 0, 1, 1], [], []>} : vector<64x240xbf16>, vector<240x32xbf16>, vector<64x32xf32> -> vector<64x32xf32>
    %c0_7 = arith.constant 0 : index
    %c0_8 = arith.constant 0 : index
    %8 = vector.load %arg3[%c0_7, %c0_8] : memref<64x32xf32, #tpu.memory_space<vmem>>, vector<64x32xf32>
    %9 = arith.addf %7, %8 : vector<64x32xf32>
    %cst_9 = arith.constant 0.000000e+00 : f32
    %10 = vector.broadcast %cst_9 : f32 to vector<64x32xf32>
    %11 = arith.maximumf %9, %10 : vector<64x32xf32>
    %c0_10 = arith.constant 0 : index
    %c0_11 = arith.constant 0 : index
    %12 = vector.load %arg6[%c0_10, %c0_11] : memref<64x32xf32, #tpu.memory_space<vmem>>, vector<64x32xf32>
    tpu.vector_store %arg6[%c0_10, %c0_11], %11 {strides = array<i32>} : memref<64x32xf32, #tpu.memory_space<vmem>>, vector<64x32xf32>,
    return
  }
  func.func @transform_0(%arg0: i32) -> (i32, i32) {
    %c0_i32 = arith.constant 0 : i32
    %c0_i32_0 = arith.constant 0 : i32
    %c0_i32_1 = arith.constant 0 : i32
    return %c0_i32, %c0_i32_0 : i32, i32
  }
  func.func @transform_1(%arg0: i32) -> (i32, i32) {
    %c0_i32 = arith.constant 0 : i32
    %c0_i32_0 = arith.constant 0 : i32
    %c0_i32_1 = arith.constant 0 : i32
    return %c0_i32, %c0_i32_0 : i32, i32
  }
  func.func @transform_2(%arg0: i32) -> (i32, i32) {
    %c0_i32 = arith.constant 0 : i32
    %c0_i32_0 = arith.constant 0 : i32
    return %arg0, %c0_i32 : i32, i32
  }
  func.func @transform_3(%arg0: i32) -> (i32, i32) {
    %c0_i32 = arith.constant 0 : i32
    %c0_i32_0 = arith.constant 0 : i32
    return %arg0, %c0_i32 : i32, i32
  }
  func.func @transform_4(%arg0: i32) -> (i32, i32) {
    %c0_i32 = arith.constant 0 : i32
    %c0_i32_0 = arith.constant 0 : i32
    return %arg0, %c0_i32 : i32, i32
  }
  func.func @transform_5(%arg0: i32) -> (i32, i32) {
    %c0_i32 = arith.constant 0 : i32
    %c0_i32_0 = arith.constant 0 : i32
    return %arg0, %c0_i32 : i32, i32
  }
}

module attributes {stable_mosaic.version = 11 : i64} {
  func.func @_conv2_kernel(%arg0: i32, %arg1: memref<240x16xbf16, #tpu.memory_space<vmem>>, %arg2: memref<64x16xf32, #tpu.memory_space<vmem>>, %arg3: memref<16x1xf32, #tpu.memory_space<vmem>>, %arg4: memref<1x1xf32, #tpu.memory_space<vmem>>, %arg5: memref<64x240xf32, #tpu.memory_space<vmem>>, %arg6: memref<64x16xf32, #tpu.memory_space<vmem>>, %arg7: memref<64x1xf32, #tpu.memory_space<vmem>>) attributes {dimension_semantics = [#tpu.dimension_semantics<parallel>], iteration_bounds = array<i64: 4>, scalar_prefetch = 0 : i64, scratch_operands = 0 : i64, tpu.core_type = #tpu.core_type<tc>, window_params = [{pipeline_mode = #tpu.pipeline_mode<synchronous>, transform_indices = @transform_0, window_bounds = array<i64: 240, 16>}, {transform_indices = @transform_1, window_bounds = array<i64: 64, 16>}, {pipeline_mode = #tpu.pipeline_mode<synchronous>, transform_indices = @transform_2, window_bounds = array<i64: 16, 1>}, {pipeline_mode = #tpu.pipeline_mode<synchronous>, transform_indices = @transform_3, window_bounds = array<i64: 1, 1>}, {transform_indices = @transform_4, window_bounds = array<i64: 64, 240>}, {transform_indices = @transform_5, window_bounds = array<i64: 64, 16>}, {transform_indices = @transform_6, window_bounds = array<i64: 64, 1>}]} {
    %c0 = arith.constant 0 : index
    %c0_0 = arith.constant 0 : index
    %0 = vector.load %arg5[%c0, %c0_0] : memref<64x240xf32, #tpu.memory_space<vmem>>, vector<64x240xf32>
    %1 = arith.truncf %0 : vector<64x240xf32> to vector<64x240xbf16>
    %c0_1 = arith.constant 0 : index
    %c0_2 = arith.constant 0 : index
    %2 = vector.load %arg1[%c0_1, %c0_2] : memref<240x16xbf16, #tpu.memory_space<vmem>>, vector<240x16xbf16>
    %cst = arith.constant dense<0.000000e+00> : vector<64x16xf32>
    %3 = tpu.matmul %1, %2, %cst {dimension_numbers = #tpu.dot_dimension_numbers<[1], [0], [0], [1], [0, 0, 1, 1], [], []>} : vector<64x240xbf16>, vector<240x16xbf16>, vector<64x16xf32> -> vector<64x16xf32>
    %c0_3 = arith.constant 0 : index
    %c0_4 = arith.constant 0 : index
    %4 = vector.load %arg2[%c0_3, %c0_4] : memref<64x16xf32, #tpu.memory_space<vmem>>, vector<64x16xf32>
    %5 = arith.addf %3, %4 : vector<64x16xf32>
    %cst_5 = arith.constant 0.000000e+00 : f32
    %6 = vector.broadcast %cst_5 : f32 to vector<64x16xf32>
    %7 = arith.maximumf %5, %6 : vector<64x16xf32>
    %c0_6 = arith.constant 0 : index
    %c0_7 = arith.constant 0 : index
    %8 = vector.load %arg6[%c0_6, %c0_7] : memref<64x16xf32, #tpu.memory_space<vmem>>, vector<64x16xf32>
    tpu.vector_store %arg6[%c0_6, %c0_7], %7 {strides = array<i32>} : memref<64x16xf32, #tpu.memory_space<vmem>>, vector<64x16xf32>,
    %c0_8 = arith.constant 0 : index
    %c0_9 = arith.constant 0 : index
    %9 = vector.load %arg3[%c0_8, %c0_9] : memref<16x1xf32, #tpu.memory_space<vmem>>, vector<16x1xf32>
    %cst_10 = arith.constant dense<0.000000e+00> : vector<64x1xf32>
    %10 = tpu.matmul %7, %9, %cst_10 {dimension_numbers = #tpu.dot_dimension_numbers<[1], [0], [0], [1], [0, 0, 1, 1], [], []>} : vector<64x16xf32>, vector<16x1xf32>, vector<64x1xf32> -> vector<64x1xf32>
    %c0_11 = arith.constant 0 : index
    %c0_12 = arith.constant 0 : index
    %11 = vector.load %arg4[%c0_11, %c0_12] : memref<1x1xf32, #tpu.memory_space<vmem>>, vector<1x1xf32>
    %12 = vector.broadcast %11 : vector<1x1xf32> to vector<64x1xf32>
    %13 = arith.addf %10, %12 : vector<64x1xf32>
    %cst_13 = arith.constant 0.000000e+00 : f32
    %14 = vector.broadcast %cst_13 : f32 to vector<64x1xf32>
    %15 = arith.subf %14, %13 : vector<64x1xf32>
    %16 = math.exp %15 : vector<64x1xf32>
    %cst_14 = arith.constant 1.000000e+00 : f32
    %17 = vector.broadcast %cst_14 : f32 to vector<64x1xf32>
    %18 = arith.addf %17, %16 : vector<64x1xf32>
    %cst_15 = arith.constant 1.000000e+00 : f32
    %19 = vector.broadcast %cst_15 : f32 to vector<64x1xf32>
    %20 = arith.divf %19, %18 : vector<64x1xf32>
    %c0_16 = arith.constant 0 : index
    %c0_17 = arith.constant 0 : index
    %21 = vector.load %arg7[%c0_16, %c0_17] : memref<64x1xf32, #tpu.memory_space<vmem>>, vector<64x1xf32>
    tpu.vector_store %arg7[%c0_16, %c0_17], %20 {strides = array<i32>} : memref<64x1xf32, #tpu.memory_space<vmem>>, vector<64x1xf32>,
    return
  }
  func.func @transform_0(%arg0: i32) -> (i32, i32) {
    %c0_i32 = arith.constant 0 : i32
    %c0_i32_0 = arith.constant 0 : i32
    %c0_i32_1 = arith.constant 0 : i32
    return %c0_i32, %c0_i32_0 : i32, i32
  }
  func.func @transform_1(%arg0: i32) -> (i32, i32) {
    %c0_i32 = arith.constant 0 : i32
    %c0_i32_0 = arith.constant 0 : i32
    return %arg0, %c0_i32 : i32, i32
  }
  func.func @transform_2(%arg0: i32) -> (i32, i32) {
    %c0_i32 = arith.constant 0 : i32
    %c0_i32_0 = arith.constant 0 : i32
    %c0_i32_1 = arith.constant 0 : i32
    return %c0_i32, %c0_i32_0 : i32, i32
  }
  func.func @transform_3(%arg0: i32) -> (i32, i32) {
    %c0_i32 = arith.constant 0 : i32
    %c0_i32_0 = arith.constant 0 : i32
    %c0_i32_1 = arith.constant 0 : i32
    return %c0_i32, %c0_i32_0 : i32, i32
  }
  func.func @transform_4(%arg0: i32) -> (i32, i32) {
    %c0_i32 = arith.constant 0 : i32
    %c0_i32_0 = arith.constant 0 : i32
    return %arg0, %c0_i32 : i32, i32
  }
  func.func @transform_5(%arg0: i32) -> (i32, i32) {
    %c0_i32 = arith.constant 0 : i32
    %c0_i32_0 = arith.constant 0 : i32
    return %arg0, %c0_i32 : i32, i32
  }
  func.func @transform_6(%arg0: i32) -> (i32, i32) {
    %c0_i32 = arith.constant 0 : i32
    %c0_i32_0 = arith.constant 0 : i32
    return %arg0, %c0_i32 : i32, i32
  }
}

</mosaic_0001>

<llo_original>
// kernel: graphsage_forward.3
$region0: #{graphsage_forward.3}
  #allocation0 [shape = 'u32[]', space=smem, size = 0x4, offset = 0x4, fixed_abs, tag = 'smem constant byte address 0x4 - core index']
  #allocation1 [shape = 'u32[144,128]{1,0:T(1,128)}', space=vmem, size = 0x12000, scoped, tag = 'internal scratch']
  %s0 = inlined_call_operand.vmem [shape: f32[240,240], index: 0, kind: input, shape index: {}]
  %s1 = inlined_call_operand.vmem [shape: f32[240,1], index: 1, kind: output, shape index: {}]
  %s2 = sld [smem:[#allocation0]]
  $region85: #{graphsage_forward.3} parent=0
    _
  %s4 = ssub.s32 1, %s2
  %s5 = scalar_select 0, %s4, %s2
  $region1: #{graphsage_forward.3} parent=0
    #allocation2 [shape = 'u8[65536]{0}', space=vmem, size = 0x10000, scoped, tag = 'output window, operand 0']
    loop: start=0, step=1, limit=6
    $region2: #{graphsage_forward.3} parent=1 // loop_pre_header
      _
    $region3: #{graphsage_forward.3} parent=1 // loop_header
      %s7 = sphi 0, %s11
      %p8 = scmp.ge.s32.totalorder %s7, 6
      %s17 = sphi 0, %s19
      %s20 = sphi 0, %s17
      %s21 = sphi 0, %s20
      %s37 = sphi 0, %s21
      %s43 = sphi 0, %s45
      %s46 = sphi 0, %s43
      %s47 = sphi 0, %s46
      %s63 = sphi 0, %s47
    $region4: #{graphsage_forward.3} parent=1 // loop_header_branch
      %10 = sbr.rel (%p8) target = $region8
    $region5: #{graphsage_forward.3} parent=1 // loop_body
      %s12 = ssub.s32 %s7, 1
      %s13 = ssub.s32 %s7, 2
      %s14 = sadd.s32 %s7, 1
      %s15 = ssub.s32 %s7, %s14
      %p16 = scmp.eq.s32.totalorder %s15, 0
      %s18 = sadd.s32 %s17, 1
      %s19 = scalar_select %p16, %s17, %s18
      %p22 = pneg %p16
      %p23 = scmp.eq.s32.totalorder %s7, 3
      %p24 = por %p22, %p23
      %p25 = scmp.ne.s32.totalorder %s17, %s20
      %p26 = scmp.eq.s32.totalorder %s7, 0
      %p27 = por %p25, %p26
      %p28 = scmp.ne.s32.totalorder %s17, %s20
      %p29 = scmp.eq.s32.totalorder %s12, 3
      %p30 = por %p28, %p29
      %p31 = scmp.ne.s32.totalorder %s20, %s21
      %p32 = scmp.eq.s32.totalorder %s12, 0
      %p33 = por %p31, %p32
      %p34 = scmp.ne.s32.totalorder %s20, %s21
      %p35 = scmp.eq.s32.totalorder %s13, 3
      %p36 = por %p34, %p35
      %p38 = scmp.ne.s32.totalorder %s21, %s37
      %p39 = scmp.eq.s32.totalorder %s13, 0
      %p40 = por %p38, %p39
      %s41 = ssub.s32 %s7, %s14
      %p42 = scmp.eq.s32.totalorder %s41, 0
      %s44 = sadd.s32 %s43, 1
      %s45 = scalar_select %p42, %s43, %s44
      %p48 = pneg %p42
      %p49 = scmp.eq.s32.totalorder %s7, 3
      %p50 = por %p48, %p49
      %p51 = scmp.ne.s32.totalorder %s43, %s46
      %p52 = scmp.eq.s32.totalorder %s7, 0
      %p53 = por %p51, %p52
      %p54 = scmp.ne.s32.totalorder %s43, %s46
      %p55 = scmp.eq.s32.totalorder %s12, 3
      %p56 = por %p54, %p55
      %p57 = scmp.ne.s32.totalorder %s46, %s47
      %p58 = scmp.eq.s32.totalorder %s12, 0
      %p59 = por %p57, %p58
      %p60 = scmp.ne.s32.totalorder %s46, %s47
      %p61 = scmp.eq.s32.totalorder %s13, 3
      %p62 = por %p60, %p61
      %p64 = scmp.ne.s32.totalorder %s47, %s63
      %p65 = scmp.eq.s32.totalorder %s13, 0
      %p66 = por %p64, %p65
      %p67 = scmp.le.s32.totalorder 1, %s7
      %p68 = scmp.lt.s32.totalorder %s7, 5
      %p69 = pnand %p67, %p68
      %p70 = pneg %p69
      // Predicated region
      $region9: #{graphsage_forward.3} parent=5 // pred_check
        _
      $region10: #{graphsage_forward.3} parent=5 // pred_check_branch
        %72 = sbr.rel (%p69) target = $region12
      $region11: #{graphsage_forward.3} parent=5 // pred_region
        %s73 = ssub.s32 %s7, 1
      $region12: #{graphsage_forward.3} parent=5 // pred_fallthru
        _
      %p74 = scmp.lt.s32.totalorder %s7, 4
      // Predicated region
      $region13: #{graphsage_forward.3} parent=5 // pred_check
        %p75 = pneg %p74
      $region14: #{graphsage_forward.3} parent=5 // pred_check_branch
        %77 = sbr.rel (%p75) target = $region16
      $region15: #{graphsage_forward.3} parent=5 // pred_region
        // Predicated region
        $region17: #{graphsage_forward.3} parent=15 // pred_check
          %p78 = pneg %p27
        $region18: #{graphsage_forward.3} parent=15 // pred_check_branch
          %80 = sbr.rel (%p78) target = $region20
        $region19: #{graphsage_forward.3} parent=15 // pred_region
          %s81 = smul.u32 8, %s7
          %s82 = ssub.s32 30, %s81
          %p83 = scmp.lt.s32.totalorder %s82, 8
          %s84 = scalar_select %p83, %s82, 8
          %s85 = smul.u32 128, %s84
          %s86 = smul.u32 %s85, 2
          %p87 = scmp.lt.s32.totalorder %s81, 29
          %s88 = scalar_select %p87, %s81, 29
          %s89 = smul.addr %s88, 2
          %s90 = smul.addr %s89, 8
          %s91 = scalar_lea.vmem %s0, %s90
          %s92 = smul.u32 8, %s7
          %s93 = ssub.s32 30, %s92
          %p94 = scmp.lt.s32.totalorder %s93, 8
          %s95 = scalar_select %p94, %s93, 8
          %s96 = smul.u32 128, %s95
          %s97 = smul.u32 %s96, 2
        $region20: #{graphsage_forward.3} parent=15 // pred_fallthru
          _
      $region16: #{graphsage_forward.3} parent=5 // pred_fallthru
        _
      %p98 = scmp.le.s32.totalorder 1, %s7
      %p99 = scmp.lt.s32.totalorder %s7, 5
      %p100 = pnand %p98, %p99
      %p101 = pneg %p100
      // Predicated region
      $region21: #{graphsage_forward.3} parent=5 // pred_check
        _
      $region22: #{graphsage_forward.3} parent=5 // pred_check_branch
        %103 = sbr.rel (%p100) target = $region24
      $region23: #{graphsage_forward.3} parent=5 // pred_region
        %s104 = ssub.s32 %s7, 1
        %s105 = smul.u32 8, %s12
        %s106 = ssub.s32 30, %s105
        %p107 = scmp.lt.s32.totalorder %s106, 8
        %s108 = scalar_select %p107, %s106, 8
        %s109 = smul.u32 128, %s108
        %s110 = smul.u32 %s109, 2
        %p111 = scmp.lt.s32.totalorder %s105, 29
        %s112 = scalar_select %p111, %s105, 29
        %s113 = smul.addr %s112, 2
        %s114 = smul.addr %s113, 8
        %s115 = scalar_lea.vmem %s0, %s114
        %p116 = pneg %p33
        %p117 = pneg %p30
        %p118 = pneg %p59
        %p119 = pneg %p56
        %s120 = sand.u32 %s46, 1
        %s121 = sand.u32 %s46, 1
        %s122 = smul.addr %s121, 64
        %s123 = scalar_lea.vmem [#allocation2], %s122
        %s124 = smul.u32 8, %s12
        %s125 = ssub.s32 30, %s124
        %p126 = scmp.lt.s32.totalorder %s125, 8
        %s127 = scalar_select %p126, %s125, 8
        %s128 = smul.u32 128, %s127
        %s129 = smul.u32 %s128, 2
        %p130 = scmp.lt.s32.totalorder %s124, 29
        %s131 = scalar_select %p130, %s124, 29
        %s132 = smul.addr %s131, 2
        %s133 = smul.addr %s132, 8
        %s134 = scalar_lea.vmem %s0, %s133
        %s135 = smul.u32 8, %s12
        %s136 = ssub.s32 30, %s135
        %p137 = scmp.lt.s32.totalorder %s136, 8
        %s138 = scalar_select %p137, %s136, 8
        %s139 = smul.u32 128, %s138
        %s140 = smul.u32 %s139, 2
        %s141 = smul.u32 8, %s12
        %s142 = ssub.s32 30, %s141
        %p143 = scmp.lt.s32.totalorder %s142, 8
        %s144 = scalar_select %p143, %s142, 8
        %s145 = smul.u32 128, %s144
        %v146 = vld [vmem:[%s134] sm:$0xff]
        %v147 = vld [vmem:[%s134 + $0x8] sm:$0xff]
        %v148 = vld [vmem:[%s134 + $0x10] sm:$0xff]
        %v149 = vld [vmem:[%s134 + $0x18] sm:$0xff]
        %v150 = vld [vmem:[%s134 + $0x20] sm:$0xff]
        %v151 = vld [vmem:[%s134 + $0x28] sm:$0xff]
        %v152 = vld [vmem:[%s134 + $0x30] sm:$0xff]
        %v153 = vld [vmem:[%s134 + $0x38] sm:$0xff]
        %v154 = vld [vmem:[%s134 + $0x40] sm:$0xff]
        %v155 = vld [vmem:[%s134 + $0x48] sm:$0xff]
        %v156 = vld [vmem:[%s134 + $0x50] sm:$0xff]
        %v157 = vld [vmem:[%s134 + $0x58] sm:$0xff]
        %v158 = vld [vmem:[%s134 + $0x60] sm:$0xff]
        %v159 = vld [vmem:[%s134 + $0x68] sm:$0xff]
        %v160 = vld [vmem:[%s134 + $0x70] sm:$0xff]
        %v161 = vld [vmem:[%s134 + $0x78] sm:$0xff]
        %vm162 = vcmask 916480
        %v163 = vsel %vm162, %v147, 0.0
        %v164 = vadd.f32 %v146, %v163
        %165 = vadd.xlane.f32.xlu0 %v164
        %v166 = vpop.xlane.xlu0 %165
        %v167 = vsel %vm162, %v149, 0.0
        %v168 = vadd.f32 %v148, %v167
        %169 = vadd.xlane.f32.xlu0 %v168
        %v170 = vpop.xlane.xlu0 %169
        %v171 = vsel %vm162, %v151, 0.0
        %v172 = vadd.f32 %v150, %v171
        %173 = vadd.xlane.f32.xlu0 %v172
        %v174 = vpop.xlane.xlu0 %173
        %v175 = vsel %vm162, %v153, 0.0
        %v176 = vadd.f32 %v152, %v175
        %177 = vadd.xlane.f32.xlu0 %v176
        %v178 = vpop.xlane.xlu0 %177
        %v179 = vsel %vm162, %v155, 0.0
        %v180 = vadd.f32 %v154, %v179
        %181 = vadd.xlane.f32.xlu0 %v180
        %v182 = vpop.xlane.xlu0 %181
        %v183 = vsel %vm162, %v157, 0.0
        %v184 = vadd.f32 %v156, %v183
        %185 = vadd.xlane.f32.xlu0 %v184
        %v186 = vpop.xlane.xlu0 %185
        %v187 = vsel %vm162, %v159, 0.0
        %v188 = vadd.f32 %v158, %v187
        %189 = vadd.xlane.f32.xlu0 %v188
        %v190 = vpop.xlane.xlu0 %189
        %v191 = vsel %vm162, %v161, 0.0
        %v192 = vadd.f32 %v160, %v191
        %193 = vadd.xlane.f32.xlu0 %v192
        %v194 = vpop.xlane.xlu0 %193
        %vm195 = vcmask 7168
        %196 = vst.msk [vmem:[%s123] sm:$0xff] %vm195, %v166
        %197 = vst.msk [vmem:[%s123 + $0x8] sm:$0xff] %vm195, %v170
        %198 = vst.msk [vmem:[%s123 + $0x10] sm:$0xff] %vm195, %v174
        %199 = vst.msk [vmem:[%s123 + $0x18] sm:$0xff] %vm195, %v178
        %200 = vst.msk [vmem:[%s123 + $0x20] sm:$0xff] %vm195, %v182
        %201 = vst.msk [vmem:[%s123 + $0x28] sm:$0xff] %vm195, %v186
        %202 = vst.msk [vmem:[%s123 + $0x30] sm:$0xff] %vm195, %v190
        %203 = vst.msk [vmem:[%s123 + $0x38] sm:$0xff] %vm195, %v194
        %s204 = sand.u32 %s46, 1
        %s205 = sand.u32 %s46, 1
        %s206 = smul.addr %s205, 64
        %s207 = scalar_lea.vmem [#allocation2], %s206
        // Predicated region
        $region25: #{graphsage_forward.3} parent=23 // pred_check
          %p208 = pneg %p56
        $region26: #{graphsage_forward.3} parent=23 // pred_check_branch
          %210 = sbr.rel (%p208) target = $region28
        $region27: #{graphsage_forward.3} parent=23 // pred_region
          %s211 = smul.u32 8, %s12
          %s212 = ssub.s32 30, %s211
          %p213 = scmp.lt.s32.totalorder %s212, 8
          %s214 = scalar_select %p213, %s212, 8
          %s215 = smul.u32 128, %s214
          %p216 = scmp.ne.s32.totalorder 0, %s215
          %s217 = smul.addr %s211, 8
          %s218 = scalar_lea.vmem %s1, %s217
          // Predicated region
          $region29: #{graphsage_forward.3} parent=27 // pred_check
            %p219 = pneg %p216
          $region30: #{graphsage_forward.3} parent=27 // pred_check_branch
            %221 = sbr.rel (%p219) target = $region32
          $region31: #{graphsage_forward.3} parent=27 // pred_region
            // Predicated region
            $region33: #{graphsage_forward.3} parent=31 // pred_check
              _
            $region34: #{graphsage_forward.3} parent=31 // pred_check_branch
              %223 = sbr.rel (0) target = $region36
            $region35: #{graphsage_forward.3} parent=31 // pred_region
              // Predicated region
              $region55: #{graphsage_forward.3} parent=35 // pred_check
                _
              $region56: #{graphsage_forward.3} parent=35 // pred_check_branch
                %287 = sbr.rel (0) target = $region58
              $region57: #{graphsage_forward.3} parent=35 // pred_region
                %s288 = sshrl.u32 %s214, 3
                // While loop
                $region59: #{graphsage_forward.3} parent=57 // loop_pre_header
                  _
                $region60: #{graphsage_forward.3} parent=57 // loop_header
                  %s290 = sphi 0, %s292
                  %p291 = scmp.ge.s32.totalorder %s290, %s288
                  %s295 = sphi 0, %s316
                  %s296 = sphi %s207, %s319
                  %s297 = sphi %s218, %s320
                $region61: #{graphsage_forward.3} parent=57 // loop_header_branch
                  %294 = sbr.rel (%p291) target = $region65
                $region62: #{graphsage_forward.3} parent=57 // loop_body
                  %v298 = vld [vmem:[%s296] sm:$0xff]
                  %299 = vst [vmem:[%s297] sm:$0xff] %v298
                  %v300 = vld [vmem:[%s296 + $0x8] sm:$0xff]
                  %301 = vst [vmem:[%s297 + $0x8] sm:$0xff] %v300
                  %v302 = vld [vmem:[%s296 + $0x10] sm:$0xff]
                  %303 = vst [vmem:[%s297 + $0x10] sm:$0xff] %v302
                  %v304 = vld [vmem:[%s296 + $0x18] sm:$0xff]
                  %305 = vst [vmem:[%s297 + $0x18] sm:$0xff] %v304
                  %v306 = vld [vmem:[%s296 + $0x20] sm:$0xff]
                  %307 = vst [vmem:[%s297 + $0x20] sm:$0xff] %v306
                  %v308 = vld [vmem:[%s296 + $0x28] sm:$0xff]
                  %309 = vst [vmem:[%s297 + $0x28] sm:$0xff] %v308
                  %v310 = vld [vmem:[%s296 + $0x30] sm:$0xff]
                  %311 = vst [vmem:[%s297 + $0x30] sm:$0xff] %v310
                  %v312 = vld [vmem:[%s296 + $0x38] sm:$0xff]
                  %313 = vst [vmem:[%s297 + $0x38] sm:$0xff] %v312
                  %s314 = sadd.s32 1, %s295
                  %p315 = scmp.ge.s32.totalorder %s314, %s288
                  %s316 = scalar_select %p315, 0, %s314
                  %s317 = smul.u32 %s316, 64
                  %s318 = smul.u32 %s316, 64
                  %s319 = scalar_lea.vmem %s207, %s317 [#allocation2]
                  %s320 = scalar_lea.vmem %s218, %s318
                $region63: #{graphsage_forward.3} parent=57 // loop_footer
                  %s292 = sadd.s32 %s290, 1
                $region64: #{graphsage_forward.3} parent=57 // loop_footer_branch
                  %289 = sbr.rel target = $region60
                $region65: #{graphsage_forward.3} parent=57 // loop_exit
                  _
                %s321 = sshrl.u32 %s214, 3
                %s322 = sand.u32 %s214, 7
                %s323 = smul.u32 %s321, 8
                %s324 = smul.u32 8, %s323
                %s325 = scalar_lea.vmem %s207, %s324 [#allocation2]
                %s326 = smul.u32 8, %s323
                %s327 = scalar_lea.vmem %s218, %s326
                // While loop
                $region66: #{graphsage_forward.3} parent=57 // loop_pre_header
                  _
                $region67: #{graphsage_forward.3} parent=57 // loop_header
                  %s329 = sphi 0, %s331
                  %p330 = scmp.ge.s32.totalorder %s329, %s322
                  %s334 = sphi 0, %s341
                  %s335 = sphi %s325, %s344
                  %s336 = sphi %s327, %s345
                $region68: #{graphsage_forward.3} parent=57 // loop_header_branch
                  %333 = sbr.rel (%p330) target = $region72
                $region69: #{graphsage_forward.3} parent=57 // loop_body
                  %v337 = vld [vmem:[%s335] sm:$0xff]
                  %338 = vst [vmem:[%s336] sm:$0xff] %v337
                  %s339 = sadd.s32 1, %s334
                  %p340 = scmp.ge.s32.totalorder %s339, %s322
                  %s341 = scalar_select %p340, 0, %s339
                  %s342 = smul.u32 %s341, 8
                  %s343 = smul.u32 %s341, 8
                  %s344 = scalar_lea.vmem %s325, %s342 [#allocation2]
                  %s345 = scalar_lea.vmem %s327, %s343
                $region70: #{graphsage_forward.3} parent=57 // loop_footer
                  %s331 = sadd.s32 %s329, 1
                $region71: #{graphsage_forward.3} parent=57 // loop_footer_branch
                  %328 = sbr.rel target = $region67
                $region72: #{graphsage_forward.3} parent=57 // loop_exit
                  _
              $region58: #{graphsage_forward.3} parent=35 // pred_fallthru
                _
              // Predicated region
              $region73: #{graphsage_forward.3} parent=35 // pred_check
                _
              $region74: #{graphsage_forward.3} parent=35 // pred_check_branch
                %347 = sbr.rel target = $region76
              $region75: #{graphsage_forward.3} parent=35 // pred_region
                _
              $region76: #{graphsage_forward.3} parent=35 // pred_fallthru
                _
            $region36: #{graphsage_forward.3} parent=31 // pred_fallthru
              _
            // Predicated region
            $region37: #{graphsage_forward.3} parent=31 // pred_check
              _
            $region38: #{graphsage_forward.3} parent=31 // pred_check_branch
              %225 = sbr.rel target = $region40
            $region39: #{graphsage_forward.3} parent=31 // pred_region
              %s227 = ssub.s32 256, 1
              %s228 = sshrl.u32 %s214, 3
              // While loop
              $region41: #{graphsage_forward.3} parent=39 // loop_pre_header
                _
              $region42: #{graphsage_forward.3} parent=39 // loop_header
                %s230 = sphi 0, %s232
                %p231 = scmp.ge.s32.totalorder %s230, %s228
                %s235 = sphi 0, %s256
                %s236 = sphi %s207, %s259
                %s237 = sphi %s218, %s260
              $region43: #{graphsage_forward.3} parent=39 // loop_header_branch
                %234 = sbr.rel (%p231) target = $region47
              $region44: #{graphsage_forward.3} parent=39 // loop_body
                %v238 = vld [vmem:[%s236] sm:%s227]
                %239 = vst [vmem:[%s237] sm:%s227] %v238
                %v240 = vld [vmem:[%s236 + $0x8] sm:%s227]
                %241 = vst [vmem:[%s237 + $0x8] sm:%s227] %v240
                %v242 = vld [vmem:[%s236 + $0x10] sm:%s227]
                %243 = vst [vmem:[%s237 + $0x10] sm:%s227] %v242
                %v244 = vld [vmem:[%s236 + $0x18] sm:%s227]
                %245 = vst [vmem:[%s237 + $0x18] sm:%s227] %v244
                %v246 = vld [vmem:[%s236 + $0x20] sm:%s227]
                %247 = vst [vmem:[%s237 + $0x20] sm:%s227] %v246
                %v248 = vld [vmem:[%s236 + $0x28] sm:%s227]
                %249 = vst [vmem:[%s237 + $0x28] sm:%s227] %v248
                %v250 = vld [vmem:[%s236 + $0x30] sm:%s227]
                %251 = vst [vmem:[%s237 + $0x30] sm:%s227] %v250
                %v252 = vld [vmem:[%s236 + $0x38] sm:%s227]
                %253 = vst [vmem:[%s237 + $0x38] sm:%s227] %v252
                %s254 = sadd.s32 1, %s235
                %p255 = scmp.ge.s32.totalorder %s254, %s228
                %s256 = scalar_select %p255, 0, %s254
                %s257 = smul.u32 %s256, 64
                %s258 = smul.u32 %s256, 64
                %s259 = scalar_lea.vmem %s207, %s257 [#allocation2]
                %s260 = scalar_lea.vmem %s218, %s258
              $region45: #{graphsage_forward.3} parent=39 // loop_footer
                %s232 = sadd.s32 %s230, 1
              $region46: #{graphsage_forward.3} parent=39 // loop_footer_branch
                %229 = sbr.rel target = $region42
              $region47: #{graphsage_forward.3} parent=39 // loop_exit
                _
              %s261 = sshrl.u32 %s214, 3
              %s262 = sand.u32 %s214, 7
              %s263 = smul.u32 %s261, 8
              %s264 = smul.u32 8, %s263
              %s265 = scalar_lea.vmem %s207, %s264 [#allocation2]
              %s266 = smul.u32 8, %s263
              %s267 = scalar_lea.vmem %s218, %s266
              // While loop
              $region48: #{graphsage_forward.3} parent=39 // loop_pre_header
                _
              $region49: #{graphsage_forward.3} parent=39 // loop_header
                %s269 = sphi 0, %s271
                %p270 = scmp.ge.s32.totalorder %s269, %s262
                %s274 = sphi 0, %s281
                %s275 = sphi %s265, %s284
                %s276 = sphi %s267, %s285
              $region50: #{graphsage_forward.3} parent=39 // loop_header_branch
                %273 = sbr.rel (%p270) target = $region54
              $region51: #{graphsage_forward.3} parent=39 // loop_body
                %v277 = vld [vmem:[%s275] sm:%s227]
                %278 = vst [vmem:[%s276] sm:%s227] %v277
                %s279 = sadd.s32 1, %s274
                %p280 = scmp.ge.s32.totalorder %s279, %s262
                %s281 = scalar_select %p280, 0, %s279
                %s282 = smul.u32 %s281, 8
                %s283 = smul.u32 %s281, 8
                %s284 = scalar_lea.vmem %s265, %s282 [#allocation2]
                %s285 = scalar_lea.vmem %s267, %s283
              $region52: #{graphsage_forward.3} parent=39 // loop_footer
                %s271 = sadd.s32 %s269, 1
              $region53: #{graphsage_forward.3} parent=39 // loop_footer_branch
                %268 = sbr.rel target = $region49
              $region54: #{graphsage_forward.3} parent=39 // loop_exit
                _
            $region40: #{graphsage_forward.3} parent=31 // pred_fallthru
              _
          $region32: #{graphsage_forward.3} parent=27 // pred_fallthru
            _
          %348 = vnop
        $region28: #{graphsage_forward.3} parent=23 // pred_fallthru
          _
      $region24: #{graphsage_forward.3} parent=5 // pred_fallthru
        _
      %p349 = scmp.le.s32.totalorder 2, %s7
      // Predicated region
      $region77: #{graphsage_forward.3} parent=5 // pred_check
        %p350 = pneg %p349
      $region78: #{graphsage_forward.3} parent=5 // pred_check_branch
        %352 = sbr.rel (%p350) target = $region80
      $region79: #{graphsage_forward.3} parent=5 // pred_region
        %s353 = ssub.s32 %s7, 2
        // Predicated region
        $region81: #{graphsage_forward.3} parent=79 // pred_check
          %p354 = pneg %p62
        $region82: #{graphsage_forward.3} parent=79 // pred_check_branch
          %356 = sbr.rel (%p354) target = $region84
        $region83: #{graphsage_forward.3} parent=79 // pred_region
          %s357 = sand.u32 %s47, 1
          %s358 = sand.u32 %s47, 1
          %s359 = smul.addr %s358, 64
          %s360 = scalar_lea.vmem [#allocation2], %s359
        $region84: #{graphsage_forward.3} parent=79 // pred_fallthru
          _
      $region80: #{graphsage_forward.3} parent=5 // pred_fallthru
        _
    $region6: #{graphsage_forward.3} parent=1 // loop_footer
      %s11 = sadd.s32 1, %s7
    $region7: #{graphsage_forward.3} parent=1 // loop_footer_branch
      %6 = sbr.rel target = $region3
    $region8: #{graphsage_forward.3} parent=1 // loop_exit
      _

// kernel: graphsage_forward.4
$region0: #{graphsage_forward.4}
  #allocation0 [shape = 'u32[]', space=smem, size = 0x4, offset = 0x4, fixed_abs, tag = 'smem constant byte address 0x4 - core index']
  #allocation1 [shape = 'u32[144,128]{1,0:T(1,128)}', space=vmem, size = 0x12000, scoped, tag = 'internal scratch']
  %s0 = inlined_call_operand.vmem [shape: f32[1,240], index: 0, kind: input, shape index: {}]
  %s1 = inlined_call_operand.vmem [shape: bf16[240,32], index: 1, kind: input, shape index: {}]
  %s2 = inlined_call_operand.vmem [shape: f32[240,32], index: 2, kind: input, shape index: {}]
  %s3 = inlined_call_operand.vmem [shape: f32[240,240], index: 3, kind: input, shape index: {}]
  %s4 = inlined_call_operand.vmem [shape: f32[240,240], index: 4, kind: output, shape index: {0}]
  %s5 = inlined_call_operand.vmem [shape: f32[240,32], index: 5, kind: output, shape index: {1}]
  %6 = xla_tuple %s4, %s5
  %s7 = sld [smem:[#allocation0]]
  $region131: #{graphsage_forward.4} parent=0
    _
  %s9 = ssub.s32 1, %s7
  %s10 = scalar_select 0, %s9, %s7
  $region1: #{graphsage_forward.4} parent=0
    #allocation2 [shape = 'u8[131072]{0}', space=vmem, size = 0x20000, scoped, tag = 'output window, operand 0']
    #allocation3 [shape = 'u8[65536]{0}', space=vmem, size = 0x10000, scoped, tag = 'output window, operand 1']
    loop: start=0, step=1, limit=6
    $region2: #{graphsage_forward.4} parent=1 // loop_pre_header
      _
    $region3: #{graphsage_forward.4} parent=1 // loop_header
      %s12 = sphi 0, %s16
      %p13 = scmp.ge.s32.totalorder %s12, 6
      %s20 = sphi 0, %s20
      %s22 = sphi 0, %s20
      %s23 = sphi 0, %s22
      %s37 = sphi 0, %s23
      %s41 = sphi 0, %s41
      %s43 = sphi 0, %s41
      %s44 = sphi 0, %s43
      %s58 = sphi 0, %s44
      %s64 = sphi 0, %s66
      %s67 = sphi 0, %s64
      %s68 = sphi 0, %s67
      %s84 = sphi 0, %s68
      %s90 = sphi 0, %s92
      %s93 = sphi 0, %s90
      %s94 = sphi 0, %s93
      %s110 = sphi 0, %s94
      %s116 = sphi 0, %s118
      %s119 = sphi 0, %s116
      %s120 = sphi 0, %s119
      %s136 = sphi 0, %s120
      %s142 = sphi 0, %s144
      %s145 = sphi 0, %s142
      %s146 = sphi 0, %s145
      %s162 = sphi 0, %s146
    $region4: #{graphsage_forward.4} parent=1 // loop_header_branch
      %15 = sbr.rel (%p13) target = $region8
    $region5: #{graphsage_forward.4} parent=1 // loop_body
      %s17 = ssub.s32 %s12, 1
      %s18 = ssub.s32 %s12, 2
      %s19 = sadd.s32 %s12, 1
      %s21 = sadd.s32 %s20, 1
      %p24 = scmp.eq.s32.totalorder %s12, 3
      %p25 = scmp.ne.s32.totalorder %s20, %s22
      %p26 = scmp.eq.s32.totalorder %s12, 0
      %p27 = por %p25, %p26
      %p28 = scmp.ne.s32.totalorder %s20, %s22
      %p29 = scmp.eq.s32.totalorder %s17, 3
      %p30 = por %p28, %p29
      %p31 = scmp.ne.s32.totalorder %s22, %s23
      %p32 = scmp.eq.s32.totalorder %s17, 0
      %p33 = por %p31, %p32
      %p34 = scmp.ne.s32.totalorder %s22, %s23
      %p35 = scmp.eq.s32.totalorder %s18, 3
      %p36 = por %p34, %p35
      %p38 = scmp.ne.s32.totalorder %s23, %s37
      %p39 = scmp.eq.s32.totalorder %s18, 0
      %p40 = por %p38, %p39
      %s42 = sadd.s32 %s41, 1
      %p45 = scmp.eq.s32.totalorder %s12, 3
      %p46 = scmp.ne.s32.totalorder %s41, %s43
      %p47 = scmp.eq.s32.totalorder %s12, 0
      %p48 = por %p46, %p47
      %p49 = scmp.ne.s32.totalorder %s41, %s43
      %p50 = scmp.eq.s32.totalorder %s17, 3
      %p51 = por %p49, %p50
      %p52 = scmp.ne.s32.totalorder %s43, %s44
      %p53 = scmp.eq.s32.totalorder %s17, 0
      %p54 = por %p52, %p53
      %p55 = scmp.ne.s32.totalorder %s43, %s44
      %p56 = scmp.eq.s32.totalorder %s18, 3
      %p57 = por %p55, %p56
      %p59 = scmp.ne.s32.totalorder %s44, %s58
      %p60 = scmp.eq.s32.totalorder %s18, 0
      %p61 = por %p59, %p60
      %s62 = ssub.s32 %s12, %s19
      %p63 = scmp.eq.s32.totalorder %s62, 0
      %s65 = sadd.s32 %s64, 1
      %s66 = scalar_select %p63, %s64, %s65
      %p69 = pneg %p63
      %p70 = scmp.eq.s32.totalorder %s12, 3
      %p71 = por %p69, %p70
      %p72 = scmp.ne.s32.totalorder %s64, %s67
      %p73 = scmp.eq.s32.totalorder %s12, 0
      %p74 = por %p72, %p73
      %p75 = scmp.ne.s32.totalorder %s64, %s67
      %p76 = scmp.eq.s32.totalorder %s17, 3
      %p77 = por %p75, %p76
      %p78 = scmp.ne.s32.totalorder %s67, %s68
      %p79 = scmp.eq.s32.totalorder %s17, 0
      %p80 = por %p78, %p79
      %p81 = scmp.ne.s32.totalorder %s67, %s68
      %p82 = scmp.eq.s32.totalorder %s18, 3
      %p83 = por %p81, %p82
      %p85 = scmp.ne.s32.totalorder %s68, %s84
      %p86 = scmp.eq.s32.totalorder %s18, 0
      %p87 = por %p85, %p86
      %s88 = ssub.s32 %s12, %s19
      %p89 = scmp.eq.s32.totalorder %s88, 0
      %s91 = sadd.s32 %s90, 1
      %s92 = scalar_select %p89, %s90, %s91
      %p95 = pneg %p89
      %p96 = scmp.eq.s32.totalorder %s12, 3
      %p97 = por %p95, %p96
      %p98 = scmp.ne.s32.totalorder %s90, %s93
      %p99 = scmp.eq.s32.totalorder %s12, 0
      %p100 = por %p98, %p99
      %p101 = scmp.ne.s32.totalorder %s90, %s93
      %p102 = scmp.eq.s32.totalorder %s17, 3
      %p103 = por %p101, %p102
      %p104 = scmp.ne.s32.totalorder %s93, %s94
      %p105 = scmp.eq.s32.totalorder %s17, 0
      %p106 = por %p104, %p105
      %p107 = scmp.ne.s32.totalorder %s93, %s94
      %p108 = scmp.eq.s32.totalorder %s18, 3
      %p109 = por %p107, %p108
      %p111 = scmp.ne.s32.totalorder %s94, %s110
      %p112 = scmp.eq.s32.totalorder %s18, 0
      %p113 = por %p111, %p112
      %s114 = ssub.s32 %s12, %s19
      %p115 = scmp.eq.s32.totalorder %s114, 0
      %s117 = sadd.s32 %s116, 1
      %s118 = scalar_select %p115, %s116, %s117
      %p121 = pneg %p115
      %p122 = scmp.eq.s32.totalorder %s12, 3
      %p123 = por %p121, %p122
      %p124 = scmp.ne.s32.totalorder %s116, %s119
      %p125 = scmp.eq.s32.totalorder %s12, 0
      %p126 = por %p124, %p125
      %p127 = scmp.ne.s32.totalorder %s116, %s119
      %p128 = scmp.eq.s32.totalorder %s17, 3
      %p129 = por %p127, %p128
      %p130 = scmp.ne.s32.totalorder %s119, %s120
      %p131 = scmp.eq.s32.totalorder %s17, 0
      %p132 = por %p130, %p131
      %p133 = scmp.ne.s32.totalorder %s119, %s120
      %p134 = scmp.eq.s32.totalorder %s18, 3
      %p135 = por %p133, %p134
      %p137 = scmp.ne.s32.totalorder %s120, %s136
      %p138 = scmp.eq.s32.totalorder %s18, 0
      %p139 = por %p137, %p138
      %s140 = ssub.s32 %s12, %s19
      %p141 = scmp.eq.s32.totalorder %s140, 0
      %s143 = sadd.s32 %s142, 1
      %s144 = scalar_select %p141, %s142, %s143
      %p147 = pneg %p141
      %p148 = scmp.eq.s32.totalorder %s12, 3
      %p149 = por %p147, %p148
      %p150 = scmp.ne.s32.totalorder %s142, %s145
      %p151 = scmp.eq.s32.totalorder %s12, 0
      %p152 = por %p150, %p151
      %p153 = scmp.ne.s32.totalorder %s142, %s145
      %p154 = scmp.eq.s32.totalorder %s17, 3
      %p155 = por %p153, %p154
      %p156 = scmp.ne.s32.totalorder %s145, %s146
      %p157 = scmp.eq.s32.totalorder %s17, 0
      %p158 = por %p156, %p157
      %p159 = scmp.ne.s32.totalorder %s145, %s146
      %p160 = scmp.eq.s32.totalorder %s18, 3
      %p161 = por %p159, %p160
      %p163 = scmp.ne.s32.totalorder %s146, %s162
      %p164 = scmp.eq.s32.totalorder %s18, 0
      %p165 = por %p163, %p164
      %p166 = scmp.le.s32.totalorder 1, %s12
      %p167 = scmp.lt.s32.totalorder %s12, 5
      %p168 = pnand %p166, %p167
      %p169 = pneg %p168
      // Predicated region
      $region9: #{graphsage_forward.4} parent=5 // pred_check
        _
      $region10: #{graphsage_forward.4} parent=5 // pred_check_branch
        %171 = sbr.rel (%p168) target = $region12
      $region11: #{graphsage_forward.4} parent=5 // pred_region
        %s172 = ssub.s32 %s12, 1
        // Predicated region
        $region13: #{graphsage_forward.4} parent=11 // pred_check
          %p173 = pneg %p33
        $region14: #{graphsage_forward.4} parent=11 // pred_check_branch
          %175 = sbr.rel (%p173) target = $region16
        $region15: #{graphsage_forward.4} parent=11 // pred_region
          _
        $region16: #{graphsage_forward.4} parent=11 // pred_fallthru
          _
        // Predicated region
        $region17: #{graphsage_forward.4} parent=11 // pred_check
          %p176 = pneg %p54
        $region18: #{graphsage_forward.4} parent=11 // pred_check_branch
          %178 = sbr.rel (%p176) target = $region20
        $region19: #{graphsage_forward.4} parent=11 // pred_region
          _
        $region20: #{graphsage_forward.4} parent=11 // pred_fallthru
          _
      $region12: #{graphsage_forward.4} parent=5 // pred_fallthru
        _
      %p179 = scmp.lt.s32.totalorder %s12, 4
      // Predicated region
      $region21: #{graphsage_forward.4} parent=5 // pred_check
        %p180 = pneg %p179
      $region22: #{graphsage_forward.4} parent=5 // pred_check_branch
        %182 = sbr.rel (%p180) target = $region24
      $region23: #{graphsage_forward.4} parent=5 // pred_region
        // Predicated region
        $region25: #{graphsage_forward.4} parent=23 // pred_check
          %p183 = pneg %p74
        $region26: #{graphsage_forward.4} parent=23 // pred_check_branch
          %185 = sbr.rel (%p183) target = $region28
        $region27: #{graphsage_forward.4} parent=23 // pred_region
          %s186 = smul.u32 8, %s12
          %s187 = ssub.s32 30, %s186
          %p188 = scmp.lt.s32.totalorder %s187, 8
          %s189 = scalar_select %p188, %s187, 8
          %s190 = smul.u32 128, %s189
          %p191 = scmp.lt.s32.totalorder %s186, 29
          %s192 = scalar_select %p191, %s186, 29
          %s193 = smul.addr %s192, 8
          %s194 = scalar_lea.vmem %s2, %s193
          %s195 = smul.u32 8, %s12
          %s196 = ssub.s32 30, %s195
          %p197 = scmp.lt.s32.totalorder %s196, 8
          %s198 = scalar_select %p197, %s196, 8
          %s199 = smul.u32 128, %s198
        $region28: #{graphsage_forward.4} parent=23 // pred_fallthru
          _
        // Predicated region
        $region29: #{graphsage_forward.4} parent=23 // pred_check
          %p200 = pneg %p100
        $region30: #{graphsage_forward.4} parent=23 // pred_check_branch
          %202 = sbr.rel (%p200) target = $region32
        $region31: #{graphsage_forward.4} parent=23 // pred_region
          %s203 = smul.u32 8, %s12
          %s204 = ssub.s32 30, %s203
          %p205 = scmp.lt.s32.totalorder %s204, 8
          %s206 = scalar_select %p205, %s204, 8
          %s207 = smul.u32 128, %s206
          %s208 = smul.u32 %s207, 2
          %p209 = scmp.lt.s32.totalorder %s203, 29
          %s210 = scalar_select %p209, %s203, 29
          %s211 = smul.addr %s210, 2
          %s212 = smul.addr %s211, 8
          %s213 = scalar_lea.vmem %s3, %s212
          %s214 = smul.u32 8, %s12
          %s215 = ssub.s32 30, %s214
          %p216 = scmp.lt.s32.totalorder %s215, 8
          %s217 = scalar_select %p216, %s215, 8
          %s218 = smul.u32 128, %s217
          %s219 = smul.u32 %s218, 2
        $region32: #{graphsage_forward.4} parent=23 // pred_fallthru
          _
      $region24: #{graphsage_forward.4} parent=5 // pred_fallthru
        _
      %p220 = scmp.le.s32.totalorder 1, %s12
      %p221 = scmp.lt.s32.totalorder %s12, 5
      %p222 = pnand %p220, %p221
      %p223 = pneg %p222
      // Predicated region
      $region33: #{graphsage_forward.4} parent=5 // pred_check
        _
      $region34: #{graphsage_forward.4} parent=5 // pred_check_branch
        %225 = sbr.rel (%p222) target = $region36
      $region35: #{graphsage_forward.4} parent=5 // pred_region
        %s226 = ssub.s32 %s12, 1
        %p227 = pneg %p33
        %p228 = pneg %p30
        %p229 = pneg %p54
        %p230 = pneg %p51
        %s231 = smul.u32 8, %s17
        %s232 = ssub.s32 30, %s231
        %p233 = scmp.lt.s32.totalorder %s232, 8
        %s234 = scalar_select %p233, %s232, 8
        %s235 = smul.u32 128, %s234
        %p236 = scmp.lt.s32.totalorder %s231, 29
        %s237 = scalar_select %p236, %s231, 29
        %s238 = smul.addr %s237, 8
        %s239 = scalar_lea.vmem %s2, %s238
        %p240 = pneg %p80
        %p241 = pneg %p77
        %s242 = smul.u32 8, %s17
        %s243 = ssub.s32 30, %s242
        %p244 = scmp.lt.s32.totalorder %s243, 8
        %s245 = scalar_select %p244, %s243, 8
        %s246 = smul.u32 128, %s245
        %s247 = smul.u32 %s246, 2
        %p248 = scmp.lt.s32.totalorder %s242, 29
        %s249 = scalar_select %p248, %s242, 29
        %s250 = smul.addr %s249, 2
        %s251 = smul.addr %s250, 8
        %s252 = scalar_lea.vmem %s3, %s251
        %p253 = pneg %p106
        %p254 = pneg %p103
        %p255 = pneg %p132
        %p256 = pneg %p129
        %s257 = sand.u32 %s119, 1
        %s258 = sand.u32 %s119, 1
        %s259 = smul.addr %s258, 128
        %s260 = scalar_lea.vmem [#allocation2], %s259
        %p261 = pneg %p158
        %p262 = pneg %p155
        %s263 = sand.u32 %s145, 1
        %s264 = sand.u32 %s145, 1
        %s265 = smul.addr %s264, 64
        %s266 = scalar_lea.vmem [#allocation3], %s265
        %s267 = smul.u32 8, %s17
        %s268 = ssub.s32 30, %s267
        %p269 = scmp.lt.s32.totalorder %s268, 8
        %s270 = scalar_select %p269, %s268, 8
        %s271 = smul.u32 128, %s270
        %p272 = scmp.lt.s32.totalorder %s267, 29
        %s273 = scalar_select %p272, %s267, 29
        %s274 = smul.addr %s273, 8
        %s275 = scalar_lea.vmem %s2, %s274
        %s276 = smul.u32 8, %s17
        %s277 = ssub.s32 30, %s276
        %p278 = scmp.lt.s32.totalorder %s277, 8
        %s279 = scalar_select %p278, %s277, 8
        %s280 = smul.u32 128, %s279
        %s281 = smul.u32 8, %s17
        %s282 = ssub.s32 30, %s281
        %p283 = scmp.lt.s32.totalorder %s282, 8
        %s284 = scalar_select %p283, %s282, 8
        %s285 = smul.u32 128, %s284
        %s286 = smul.u32 %s285, 2
        %p287 = scmp.lt.s32.totalorder %s281, 29
        %s288 = scalar_select %p287, %s281, 29
        %s289 = smul.addr %s288, 2
        %s290 = smul.addr %s289, 8
        %s291 = scalar_lea.vmem %s3, %s290
        %s292 = smul.u32 8, %s17
        %s293 = ssub.s32 30, %s292
        %p294 = scmp.lt.s32.totalorder %s293, 8
        %s295 = scalar_select %p294, %s293, 8
        %s296 = smul.u32 128, %s295
        %s297 = smul.u32 %s296, 2
        %s298 = smul.u32 8, %s17
        %s299 = ssub.s32 30, %s298
        %p300 = scmp.lt.s32.totalorder %s299, 8
        %s301 = scalar_select %p300, %s299, 8
        %s302 = smul.u32 128, %s301
        %s303 = smul.u32 %s302, 2
        %s304 = smul.u32 8, %s17
        %s305 = ssub.s32 30, %s304
        %p306 = scmp.lt.s32.totalorder %s305, 8
        %s307 = scalar_select %p306, %s305, 8
        %s308 = smul.u32 128, %s307
        %v310 = vld [vmem:[%s291] sm:$0xff]
        %v311 = vld [vmem:[%s291 + $0x8] sm:$0xff]
        %v312 = vld [vmem:[%s291 + $0x10] sm:$0xff]
        %v313 = vld [vmem:[%s291 + $0x18] sm:$0xff]
        %v314 = vld [vmem:[%s291 + $0x20] sm:$0xff]
        %v315 = vld [vmem:[%s291 + $0x28] sm:$0xff]
        %v316 = vld [vmem:[%s291 + $0x30] sm:$0xff]
        %v317 = vld [vmem:[%s291 + $0x38] sm:$0xff]
        %v318 = vld [vmem:[%s291 + $0x40] sm:$0xff]
        %v319 = vld [vmem:[%s291 + $0x48] sm:$0xff]
        %v320 = vld [vmem:[%s291 + $0x50] sm:$0xff]
        %v321 = vld [vmem:[%s291 + $0x58] sm:$0xff]
        %v322 = vld [vmem:[%s291 + $0x60] sm:$0xff]
        %v323 = vld [vmem:[%s291 + $0x68] sm:$0xff]
        %v324 = vld [vmem:[%s291 + $0x70] sm:$0xff]
        %v325 = vld [vmem:[%s291 + $0x78] sm:$0xff]
        %v326 = vld [vmem:[%s0] sm:$0x3]
        %v328 = vlaneseq
        %v329 = vshrl.u32 %v328, 7
        %v330 = vsub.s32 0, %v329
        %v331 = vrot.slane %v326, %v330
        %v332 = vlaneseq
        %v333 = vshrl.u32 %v332, 7
        %v334 = vsub.s32 1, %v333
        %v335 = vrot.slane %v326, %v334
        %v338 = vmul.f32 %v310, %v331
        %v339 = vmul.f32 %v311, %v335
        %v340 = vmul.f32 %v312, %v331
        %v341 = vmul.f32 %v313, %v335
        %v342 = vmul.f32 %v314, %v331
        %v343 = vmul.f32 %v315, %v335
        %v344 = vmul.f32 %v316, %v331
        %v345 = vmul.f32 %v317, %v335
        %v346 = vmul.f32 %v318, %v331
        %v347 = vmul.f32 %v319, %v335
        %v348 = vmul.f32 %v320, %v331
        %v349 = vmul.f32 %v321, %v335
        %v350 = vmul.f32 %v322, %v331
        %v351 = vmul.f32 %v323, %v335
        %v352 = vmul.f32 %v324, %v331
        %v353 = vmul.f32 %v325, %v335
        %354 = vst [vmem:[%s260] sm:$0xff] %v338
        %vm355 = vcmask 916480
        %356 = vst.msk [vmem:[%s260 + $0x8] sm:$0xff] %vm355, %v339
        %357 = vst [vmem:[%s260 + $0x10] sm:$0xff] %v340
        %358 = vst.msk [vmem:[%s260 + $0x18] sm:$0xff] %vm355, %v341
        %359 = vst [vmem:[%s260 + $0x20] sm:$0xff] %v342
        %360 = vst.msk [vmem:[%s260 + $0x28] sm:$0xff] %vm355, %v343
        %361 = vst [vmem:[%s260 + $0x30] sm:$0xff] %v344
        %362 = vst.msk [vmem:[%s260 + $0x38] sm:$0xff] %vm355, %v345
        %363 = vst [vmem:[%s260 + $0x40] sm:$0xff] %v346
        %364 = vst.msk [vmem:[%s260 + $0x48] sm:$0xff] %vm355, %v347
        %365 = vst [vmem:[%s260 + $0x50] sm:$0xff] %v348
        %366 = vst.msk [vmem:[%s260 + $0x58] sm:$0xff] %vm355, %v349
        %367 = vst [vmem:[%s260 + $0x60] sm:$0xff] %v350
        %368 = vst.msk [vmem:[%s260 + $0x68] sm:$0xff] %vm355, %v351
        %369 = vst [vmem:[%s260 + $0x70] sm:$0xff] %v352
        %370 = vst.msk [vmem:[%s260 + $0x78] sm:$0xff] %vm355, %v353
        %v371 = vpack.c.bf16 %v340, %v338
        %v372 = vpack.c.bf16 %v341, %v339
        %v373 = vpack.c.bf16 %v344, %v342
        %v374 = vpack.c.bf16 %v345, %v343
        %v375 = vpack.c.bf16 %v348, %v346
        %v376 = vpack.c.bf16 %v349, %v347
        %v377 = vpack.c.bf16 %v352, %v350
        %v378 = vpack.c.bf16 %v353, %v351
        %v379 = vld [vmem:[%s1] sm:$0xf]
        %v380 = vld [vmem:[%s1 + $0x4] sm:$0xf]
        %v381 = vld [vmem:[%s1 + $0x8] sm:$0xf]
        %v382 = vld [vmem:[%s1 + $0xc] sm:$0xf]
        %v383 = vld [vmem:[%s1 + $0x10] sm:$0xf]
        %v384 = vld [vmem:[%s1 + $0x14] sm:$0xf]
        %v385 = vld [vmem:[%s1 + $0x18] sm:$0xf]
        %v386 = vld [vmem:[%s1 + $0x1c] sm:$0xf]
        %v387 = vld [vmem:[%s1 + $0x20] sm:$0xf]
        %v388 = vld [vmem:[%s1 + $0x24] sm:$0xf]
        %v389 = vld [vmem:[%s1 + $0x28] sm:$0xf]
        %v390 = vld [vmem:[%s1 + $0x2c] sm:$0xf]
        %v391 = vld [vmem:[%s1 + $0x30] sm:$0xf]
        %v392 = vld [vmem:[%s1 + $0x34] sm:$0xf]
        %v393 = vld [vmem:[%s1 + $0x38] sm:$0xf]
        %v394 = vld [vmem:[%s1 + $0x3c] sm:$0xf]
        %v395 = vld [vmem:[%s1 + $0x40] sm:$0xf]
        %v396 = vld [vmem:[%s1 + $0x44] sm:$0xf]
        %v397 = vld [vmem:[%s1 + $0x48] sm:$0xf]
        %v398 = vld [vmem:[%s1 + $0x4c] sm:$0xf]
        %v399 = vld [vmem:[%s1 + $0x50] sm:$0xf]
        %v400 = vld [vmem:[%s1 + $0x54] sm:$0xf]
        %v401 = vld [vmem:[%s1 + $0x58] sm:$0xf]
        %v402 = vld [vmem:[%s1 + $0x5c] sm:$0xf]
        %v403 = vld [vmem:[%s1 + $0x60] sm:$0xf]
        %v404 = vld [vmem:[%s1 + $0x64] sm:$0xf]
        %v405 = vld [vmem:[%s1 + $0x68] sm:$0xf]
        %v406 = vld [vmem:[%s1 + $0x6c] sm:$0xf]
        %v407 = vld [vmem:[%s1 + $0x70] sm:$0xf]
        %v408 = vld [vmem:[%s1 + $0x74] sm:$0xf]
        %v409 = vld [vmem:[%s275] sm:$0xff]
        %v410 = vld [vmem:[%s275 + $0x8] sm:$0xff]
        %v411 = vld [vmem:[%s275 + $0x10] sm:$0xff]
        %v412 = vld [vmem:[%s275 + $0x18] sm:$0xff]
        %v413 = vld [vmem:[%s275 + $0x20] sm:$0xff]
        %v414 = vld [vmem:[%s275 + $0x28] sm:$0xff]
        %v415 = vld [vmem:[%s275 + $0x30] sm:$0xff]
        %v416 = vld [vmem:[%s275 + $0x38] sm:$0xff]
        %v447 = vunpack.c.l.b16 %v379
        %v448 = vunpack.c.l.b16 %v380
        %v449 = vunpack.c.l.b16 %v381
        %v450 = vunpack.c.l.b16 %v382
        %v451 = vunpack.c.l.b16 %v383
        %v452 = vunpack.c.l.b16 %v384
        %v453 = vunpack.c.l.b16 %v385
        %v454 = vunpack.c.l.b16 %v386
        %v455 = vunpack.c.l.b16 %v387
        %v456 = vunpack.c.l.b16 %v388
        %v457 = vunpack.c.l.b16 %v389
        %v458 = vunpack.c.l.b16 %v390
        %v459 = vunpack.c.l.b16 %v391
        %v460 = vunpack.c.l.b16 %v392
        %v461 = vunpack.c.l.b16 %v393
        %v462 = vunpack.c.l.b16 %v394
        %v463 = vunpack.c.l.b16 %v395
        %v464 = vunpack.c.l.b16 %v396
        %v465 = vunpack.c.l.b16 %v397
        %v466 = vunpack.c.l.b16 %v398
        %v467 = vunpack.c.l.b16 %v399
        %v468 = vunpack.c.l.b16 %v400
        %v469 = vunpack.c.l.b16 %v401
        %v470 = vunpack.c.l.b16 %v402
        %v471 = vunpack.c.l.b16 %v403
        %v472 = vunpack.c.l.b16 %v404
        %v473 = vunpack.c.l.b16 %v405
        %v474 = vunpack.c.l.b16 %v406
        %v475 = vunpack.c.l.b16 %v407
        %v476 = vunpack.c.l.b16 %v408
        %v477 = vpack.c.b16 %v448, %v447
        %v478 = vpack.c.b16 %v450, %v449
        %v479 = vpack.c.b16 %v452, %v451
        %v480 = vpack.c.b16 %v454, %v453
        %v481 = vpack.c.b16 %v456, %v455
        %v482 = vpack.c.b16 %v458, %v457
        %v483 = vpack.c.b16 %v460, %v459
        %v484 = vpack.c.b16 %v462, %v461
        %v485 = vpack.c.b16 %v464, %v463
        %v486 = vpack.c.b16 %v466, %v465
        %v487 = vpack.c.b16 %v468, %v467
        %v488 = vpack.c.b16 %v470, %v469
        %v489 = vpack.c.b16 %v472, %v471
        %v490 = vpack.c.b16 %v474, %v473
        %v491 = vpack.c.b16 %v476, %v475
        %v508 = vsel %vm355, %v372, 0
        %v511 = vsel %vm355, %v374, 0
        %v514 = vsel %vm355, %v376, 0
        %v517 = vsel %vm355, %v378, 0
        %519 = vmatprep.subr.bf16.mxu0 0
        %520 = vmatpush1.bf16.msra.mxu0 %v484
        %521 = vmatprep.subr.bf16.mxu0 0
        %522 = vmatpush1.bf16.msra.mxu0 %v483
        %523 = vmatprep.subr.bf16.mxu0 0
        %524 = vmatpush1.bf16.msra.mxu0 %v482
        %525 = vmatprep.subr.bf16.mxu0 0
        %526 = vmatpush1.bf16.msra.mxu0 %v481
        %527 = vmatprep.subr.bf16.mxu0 0
        %528 = vmatpush1.bf16.msra.mxu0 %v480
        %529 = vmatprep.subr.bf16.mxu0 0
        %530 = vmatpush1.bf16.msra.mxu0 %v479
        %531 = vmatprep.subr.bf16.mxu0 0
        %532 = vmatpush1.bf16.msra.mxu0 %v478
        %533 = vmatprep.subr.bf16.mxu0 0
        %534 = vmatpush1.bf16.msra.mxu0 %v477
        %535 = vmatprep.subr.bf16.mxu0 0
        %536 = vmatpush2.bf16.msra.mxu0 0
        %537 = vmatprep.subr.bf16.mxu0 0
        %538 = vmatpush2.bf16.msra.mxu0 %v491
        %539 = vmatprep.subr.bf16.mxu0 0
        %540 = vmatpush2.bf16.msra.mxu0 %v490
        %541 = vmatprep.subr.bf16.mxu0 0
        %542 = vmatpush2.bf16.msra.mxu0 %v489
        %543 = vmatprep.subr.bf16.mxu0 0
        %544 = vmatpush2.bf16.msra.mxu0 %v488
        %545 = vmatprep.subr.bf16.mxu0 0
        %546 = vmatpush2.bf16.msra.mxu0 %v487
        %547 = vmatprep.subr.bf16.mxu0 0
        %548 = vmatpush2.bf16.msra.mxu0 %v486
        %549 = vmatprep.subr.bf16.mxu0 0
        %550 = vmatpush2.bf16.msra.mxu0 %v485
        %551 = vmatprep.mubr.bf16.mxu0 %v508
        %552 = vmatmul.mubr.bf16.gmra.mxu0 %v371
        %v553 = vpop.f32.mrf.mxu0
        %v554 = vadd.f32 %v409, %v553
        %v555 = vpop.f32.mrf.mxu0
        %v556 = vpop.f32.mrf.mxu0
        %v557 = vadd.f32 %v410, %v556
        %v558 = vpop.f32.mrf.mxu0
        %559 = vmatprep.mubr.bf16.mxu0 %v511
        %560 = vmatmul.mubr.bf16.gmra.mxu0 %v373
        %v561 = vpop.f32.mrf.mxu0
        %v562 = vadd.f32 %v411, %v561
        %v563 = vpop.f32.mrf.mxu0
        %v564 = vpop.f32.mrf.mxu0
        %v565 = vadd.f32 %v412, %v564
        %v566 = vpop.f32.mrf.mxu0
        %567 = vmatprep.mubr.bf16.mxu0 %v514
        %568 = vmatmul.mubr.bf16.gmra.mxu0 %v375
        %v569 = vpop.f32.mrf.mxu0
        %v570 = vadd.f32 %v413, %v569
        %v571 = vpop.f32.mrf.mxu0
        %v572 = vpop.f32.mrf.mxu0
        %v573 = vadd.f32 %v414, %v572
        %v574 = vpop.f32.mrf.mxu0
        %575 = vmatprep.mubr.bf16.mxu0 %v517
        %576 = vmatmul.mubr.bf16.gmra.mxu0 %v377
        %v577 = vpop.f32.mrf.mxu0
        %v578 = vadd.f32 %v415, %v577
        %v579 = vpop.f32.mrf.mxu0
        %v580 = vpop.f32.mrf.mxu0
        %v581 = vadd.f32 %v416, %v580
        %v582 = vpop.f32.mrf.mxu0
        %583 = vdwg.mxu0
        %v584 = vmax.f32 %v554, 0.0
        %v585 = vmax.f32 %v557, 0.0
        %v586 = vmax.f32 %v562, 0.0
        %v587 = vmax.f32 %v565, 0.0
        %v588 = vmax.f32 %v570, 0.0
        %v589 = vmax.f32 %v573, 0.0
        %v590 = vmax.f32 %v578, 0.0
        %v591 = vmax.f32 %v581, 0.0
        %vm592 = vcmask 261120
        %593 = vst.msk [vmem:[%s266] sm:$0xff] %vm592, %v584
        %594 = vst.msk [vmem:[%s266 + $0x8] sm:$0xff] %vm592, %v585
        %595 = vst.msk [vmem:[%s266 + $0x10] sm:$0xff] %vm592, %v586
        %596 = vst.msk [vmem:[%s266 + $0x18] sm:$0xff] %vm592, %v587
        %597 = vst.msk [vmem:[%s266 + $0x20] sm:$0xff] %vm592, %v588
        %598 = vst.msk [vmem:[%s266 + $0x28] sm:$0xff] %vm592, %v589
        %599 = vst.msk [vmem:[%s266 + $0x30] sm:$0xff] %vm592, %v590
        %600 = vst.msk [vmem:[%s266 + $0x38] sm:$0xff] %vm592, %v591
        %s601 = sand.u32 %s119, 1
        %s602 = sand.u32 %s119, 1
        %s603 = smul.addr %s602, 128
        %s604 = scalar_lea.vmem [#allocation2], %s603
        %s605 = sand.u32 %s145, 1
        %s606 = sand.u32 %s145, 1
        %s607 = smul.addr %s606, 64
        %s608 = scalar_lea.vmem [#allocation3], %s607
        // Predicated region
        $region37: #{graphsage_forward.4} parent=35 // pred_check
          %p609 = pneg %p129
        $region38: #{graphsage_forward.4} parent=35 // pred_check_branch
          %611 = sbr.rel (%p609) target = $region40
        $region39: #{graphsage_forward.4} parent=35 // pred_region
          %s612 = smul.u32 8, %s17
          %s613 = ssub.s32 30, %s612
          %p614 = scmp.lt.s32.totalorder %s613, 8
          %s615 = scalar_select %p614, %s613, 8
          %s616 = smul.u32 128, %s615
          %s617 = smul.u32 %s616, 2
          %p618 = scmp.ne.s32.totalorder 0, %s617
          %s619 = smul.addr %s612, 2
          %s620 = smul.addr %s619, 8
          %s621 = scalar_lea.vmem %s4, %s620
          // Predicated region
          $region41: #{graphsage_forward.4} parent=39 // pred_check
            %p622 = pneg %p618
          $region42: #{graphsage_forward.4} parent=39 // pred_check_branch
            %624 = sbr.rel (%p622) target = $region44
          $region43: #{graphsage_forward.4} parent=39 // pred_region
            // Predicated region
            $region45: #{graphsage_forward.4} parent=43 // pred_check
              _
            $region46: #{graphsage_forward.4} parent=43 // pred_check_branch
              %626 = sbr.rel (0) target = $region48
            $region47: #{graphsage_forward.4} parent=43 // pred_region
              %s627 = sshrl.u32 %s615, 3
              // While loop
              $region49: #{graphsage_forward.4} parent=47 // loop_pre_header
                _
              $region50: #{graphsage_forward.4} parent=47 // loop_header
                %s629 = sphi 0, %s631
                %p630 = scmp.ge.s32.totalorder %s629, %s627
                %s634 = sphi 0, %s671
                %s635 = sphi %s604, %s674
                %s636 = sphi %s621, %s675
              $region51: #{graphsage_forward.4} parent=47 // loop_header_branch
                %633 = sbr.rel (%p630) target = $region55
              $region52: #{graphsage_forward.4} parent=47 // loop_body
                %v637 = vld [vmem:[%s635] sm:$0xff]
                %638 = vst [vmem:[%s636] sm:$0xff] %v637
                %v639 = vld [vmem:[%s635 + $0x10] sm:$0xff]
                %640 = vst [vmem:[%s636 + $0x10] sm:$0xff] %v639
                %v641 = vld [vmem:[%s635 + $0x20] sm:$0xff]
                %642 = vst [vmem:[%s636 + $0x20] sm:$0xff] %v641
                %v643 = vld [vmem:[%s635 + $0x30] sm:$0xff]
                %644 = vst [vmem:[%s636 + $0x30] sm:$0xff] %v643
                %v645 = vld [vmem:[%s635 + $0x40] sm:$0xff]
                %646 = vst [vmem:[%s636 + $0x40] sm:$0xff] %v645
                %v647 = vld [vmem:[%s635 + $0x50] sm:$0xff]
                %648 = vst [vmem:[%s636 + $0x50] sm:$0xff] %v647
                %v649 = vld [vmem:[%s635 + $0x60] sm:$0xff]
                %650 = vst [vmem:[%s636 + $0x60] sm:$0xff] %v649
                %v651 = vld [vmem:[%s635 + $0x70] sm:$0xff]
                %652 = vst [vmem:[%s636 + $0x70] sm:$0xff] %v651
                %v653 = vld [vmem:[%s635 + $0x8] sm:$0xff]
                %654 = vst [vmem:[%s636 + $0x8] sm:$0xff] %v653
                %v655 = vld [vmem:[%s635 + $0x18] sm:$0xff]
                %656 = vst [vmem:[%s636 + $0x18] sm:$0xff] %v655
                %v657 = vld [vmem:[%s635 + $0x28] sm:$0xff]
                %658 = vst [vmem:[%s636 + $0x28] sm:$0xff] %v657
                %v659 = vld [vmem:[%s635 + $0x38] sm:$0xff]
                %660 = vst [vmem:[%s636 + $0x38] sm:$0xff] %v659
                %v661 = vld [vmem:[%s635 + $0x48] sm:$0xff]
                %662 = vst [vmem:[%s636 + $0x48] sm:$0xff] %v661
                %v663 = vld [vmem:[%s635 + $0x58] sm:$0xff]
                %664 = vst [vmem:[%s636 + $0x58] sm:$0xff] %v663
                %v665 = vld [vmem:[%s635 + $0x68] sm:$0xff]
                %666 = vst [vmem:[%s636 + $0x68] sm:$0xff] %v665
                %v667 = vld [vmem:[%s635 + $0x78] sm:$0xff]
                %668 = vst [vmem:[%s636 + $0x78] sm:$0xff] %v667
                %s669 = sadd.s32 1, %s634
                %p670 = scmp.ge.s32.totalorder %s669, %s627
                %s671 = scalar_select %p670, 0, %s669
                %s672 = smul.u32 %s671, 128
                %s673 = smul.u32 %s671, 128
                %s674 = scalar_lea.vmem %s604, %s672 [#allocation2]
                %s675 = scalar_lea.vmem %s621, %s673
              $region53: #{graphsage_forward.4} parent=47 // loop_footer
                %s631 = sadd.s32 %s629, 1
              $region54: #{graphsage_forward.4} parent=47 // loop_footer_branch
                %628 = sbr.rel target = $region50
              $region55: #{graphsage_forward.4} parent=47 // loop_exit
                _
              %s676 = sshrl.u32 %s615, 3
              %s677 = sand.u32 %s615, 7
              %s678 = smul.u32 %s676, 8
              %s679 = smul.u32 16, %s678
              %s680 = scalar_lea.vmem %s604, %s679 [#allocation2]
              %s681 = smul.u32 16, %s678
              %s682 = scalar_lea.vmem %s621, %s681
              // While loop
              $region56: #{graphsage_forward.4} parent=47 // loop_pre_header
                _
              $region57: #{graphsage_forward.4} parent=47 // loop_header
                %s684 = sphi 0, %s686
                %p685 = scmp.ge.s32.totalorder %s684, %s677
                %s689 = sphi 0, %s698
                %s690 = sphi %s680, %s701
                %s691 = sphi %s682, %s702
              $region58: #{graphsage_forward.4} parent=47 // loop_header_branch
                %688 = sbr.rel (%p685) target = $region62
              $region59: #{graphsage_forward.4} parent=47 // loop_body
                %v692 = vld [vmem:[%s690] sm:$0xff]
                %693 = vst [vmem:[%s691] sm:$0xff] %v692
                %v694 = vld [vmem:[%s690 + $0x8] sm:$0xff]
                %695 = vst [vmem:[%s691 + $0x8] sm:$0xff] %v694
                %s696 = sadd.s32 1, %s689
                %p697 = scmp.ge.s32.totalorder %s696, %s677
                %s698 = scalar_select %p697, 0, %s696
                %s699 = smul.u32 %s698, 16
                %s700 = smul.u32 %s698, 16
                %s701 = scalar_lea.vmem %s680, %s699 [#allocation2]
                %s702 = scalar_lea.vmem %s682, %s700
              $region60: #{graphsage_forward.4} parent=47 // loop_footer
                %s686 = sadd.s32 %s684, 1
              $region61: #{graphsage_forward.4} parent=47 // loop_footer_branch
                %683 = sbr.rel target = $region57
              $region62: #{graphsage_forward.4} parent=47 // loop_exit
                _
            $region48: #{graphsage_forward.4} parent=43 // pred_fallthru
              _
            // Predicated region
            $region63: #{graphsage_forward.4} parent=43 // pred_check
              _
            $region64: #{graphsage_forward.4} parent=43 // pred_check_branch
              %704 = sbr.rel target = $region66
            $region65: #{graphsage_forward.4} parent=43 // pred_region
              _
            $region66: #{graphsage_forward.4} parent=43 // pred_fallthru
              _
          $region44: #{graphsage_forward.4} parent=39 // pred_fallthru
            _
          %705 = vnop
        $region40: #{graphsage_forward.4} parent=35 // pred_fallthru
          _
        // Predicated region
        $region67: #{graphsage_forward.4} parent=35 // pred_check
          %p706 = pneg %p155
        $region68: #{graphsage_forward.4} parent=35 // pred_check_branch
          %708 = sbr.rel (%p706) target = $region70
        $region69: #{graphsage_forward.4} parent=35 // pred_region
          %s709 = smul.u32 8, %s17
          %s710 = ssub.s32 30, %s709
          %p711 = scmp.lt.s32.totalorder %s710, 8
          %s712 = scalar_select %p711, %s710, 8
          %s713 = smul.u32 128, %s712
          %p714 = scmp.ne.s32.totalorder 0, %s713
          %s715 = smul.addr %s709, 8
          %s716 = scalar_lea.vmem %s5, %s715
          // Predicated region
          $region71: #{graphsage_forward.4} parent=69 // pred_check
            %p717 = pneg %p714
          $region72: #{graphsage_forward.4} parent=69 // pred_check_branch
            %719 = sbr.rel (%p717) target = $region74
          $region73: #{graphsage_forward.4} parent=69 // pred_region
            // Predicated region
            $region75: #{graphsage_forward.4} parent=73 // pred_check
              _
            $region76: #{graphsage_forward.4} parent=73 // pred_check_branch
              %721 = sbr.rel (0) target = $region78
            $region77: #{graphsage_forward.4} parent=73 // pred_region
              // Predicated region
              $region97: #{graphsage_forward.4} parent=77 // pred_check
                _
              $region98: #{graphsage_forward.4} parent=77 // pred_check_branch
                %785 = sbr.rel (0) target = $region100
              $region99: #{graphsage_forward.4} parent=77 // pred_region
                %s786 = sshrl.u32 %s712, 3
                // While loop
                $region101: #{graphsage_forward.4} parent=99 // loop_pre_header
                  _
                $region102: #{graphsage_forward.4} parent=99 // loop_header
                  %s788 = sphi 0, %s790
                  %p789 = scmp.ge.s32.totalorder %s788, %s786
                  %s793 = sphi 0, %s814
                  %s794 = sphi %s608, %s817
                  %s795 = sphi %s716, %s818
                $region103: #{graphsage_forward.4} parent=99 // loop_header_branch
                  %792 = sbr.rel (%p789) target = $region107
                $region104: #{graphsage_forward.4} parent=99 // loop_body
                  %v796 = vld [vmem:[%s794] sm:$0xff]
                  %797 = vst [vmem:[%s795] sm:$0xff] %v796
                  %v798 = vld [vmem:[%s794 + $0x8] sm:$0xff]
                  %799 = vst [vmem:[%s795 + $0x8] sm:$0xff] %v798
                  %v800 = vld [vmem:[%s794 + $0x10] sm:$0xff]
                  %801 = vst [vmem:[%s795 + $0x10] sm:$0xff] %v800
                  %v802 = vld [vmem:[%s794 + $0x18] sm:$0xff]
                  %803 = vst [vmem:[%s795 + $0x18] sm:$0xff] %v802
                  %v804 = vld [vmem:[%s794 + $0x20] sm:$0xff]
                  %805 = vst [vmem:[%s795 + $0x20] sm:$0xff] %v804
                  %v806 = vld [vmem:[%s794 + $0x28] sm:$0xff]
                  %807 = vst [vmem:[%s795 + $0x28] sm:$0xff] %v806
                  %v808 = vld [vmem:[%s794 + $0x30] sm:$0xff]
                  %809 = vst [vmem:[%s795 + $0x30] sm:$0xff] %v808
                  %v810 = vld [vmem:[%s794 + $0x38] sm:$0xff]
                  %811 = vst [vmem:[%s795 + $0x38] sm:$0xff] %v810
                  %s812 = sadd.s32 1, %s793
                  %p813 = scmp.ge.s32.totalorder %s812, %s786
                  %s814 = scalar_select %p813, 0, %s812
                  %s815 = smul.u32 %s814, 64
                  %s816 = smul.u32 %s814, 64
                  %s817 = scalar_lea.vmem %s608, %s815 [#allocation3]
                  %s818 = scalar_lea.vmem %s716, %s816
                $region105: #{graphsage_forward.4} parent=99 // loop_footer
                  %s790 = sadd.s32 %s788, 1
                $region106: #{graphsage_forward.4} parent=99 // loop_footer_branch
                  %787 = sbr.rel target = $region102
                $region107: #{graphsage_forward.4} parent=99 // loop_exit
                  _
                %s819 = sshrl.u32 %s712, 3
                %s820 = sand.u32 %s712, 7
                %s821 = smul.u32 %s819, 8
                %s822 = smul.u32 8, %s821
                %s823 = scalar_lea.vmem %s608, %s822 [#allocation3]
                %s824 = smul.u32 8, %s821
                %s825 = scalar_lea.vmem %s716, %s824
                // While loop
                $region108: #{graphsage_forward.4} parent=99 // loop_pre_header
                  _
                $region109: #{graphsage_forward.4} parent=99 // loop_header
                  %s827 = sphi 0, %s829
                  %p828 = scmp.ge.s32.totalorder %s827, %s820
                  %s832 = sphi 0, %s839
                  %s833 = sphi %s823, %s842
                  %s834 = sphi %s825, %s843
                $region110: #{graphsage_forward.4} parent=99 // loop_header_branch
                  %831 = sbr.rel (%p828) target = $region114
                $region111: #{graphsage_forward.4} parent=99 // loop_body
                  %v835 = vld [vmem:[%s833] sm:$0xff]
                  %836 = vst [vmem:[%s834] sm:$0xff] %v835
                  %s837 = sadd.s32 1, %s832
                  %p838 = scmp.ge.s32.totalorder %s837, %s820
                  %s839 = scalar_select %p838, 0, %s837
                  %s840 = smul.u32 %s839, 8
                  %s841 = smul.u32 %s839, 8
                  %s842 = scalar_lea.vmem %s823, %s840 [#allocation3]
                  %s843 = scalar_lea.vmem %s825, %s841
                $region112: #{graphsage_forward.4} parent=99 // loop_footer
                  %s829 = sadd.s32 %s827, 1
                $region113: #{graphsage_forward.4} parent=99 // loop_footer_branch
                  %826 = sbr.rel target = $region109
                $region114: #{graphsage_forward.4} parent=99 // loop_exit
                  _
              $region100: #{graphsage_forward.4} parent=77 // pred_fallthru
                _
              // Predicated region
              $region115: #{graphsage_forward.4} parent=77 // pred_check
                _
              $region116: #{graphsage_forward.4} parent=77 // pred_check_branch
                %845 = sbr.rel target = $region118
              $region117: #{graphsage_forward.4} parent=77 // pred_region
                _
              $region118: #{graphsage_forward.4} parent=77 // pred_fallthru
                _
            $region78: #{graphsage_forward.4} parent=73 // pred_fallthru
              _
            // Predicated region
            $region79: #{graphsage_forward.4} parent=73 // pred_check
              _
            $region80: #{graphsage_forward.4} parent=73 // pred_check_branch
              %723 = sbr.rel target = $region82
            $region81: #{graphsage_forward.4} parent=73 // pred_region
              %s725 = ssub.s32 256, 1
              %s726 = sshrl.u32 %s712, 3
              // While loop
              $region83: #{graphsage_forward.4} parent=81 // loop_pre_header
                _
              $region84: #{graphsage_forward.4} parent=81 // loop_header
                %s728 = sphi 0, %s730
                %p729 = scmp.ge.s32.totalorder %s728, %s726
                %s733 = sphi 0, %s754
                %s734 = sphi %s608, %s757
                %s735 = sphi %s716, %s758
              $region85: #{graphsage_forward.4} parent=81 // loop_header_branch
                %732 = sbr.rel (%p729) target = $region89
              $region86: #{graphsage_forward.4} parent=81 // loop_body
                %v736 = vld [vmem:[%s734] sm:%s725]
                %737 = vst [vmem:[%s735] sm:%s725] %v736
                %v738 = vld [vmem:[%s734 + $0x8] sm:%s725]
                %739 = vst [vmem:[%s735 + $0x8] sm:%s725] %v738
                %v740 = vld [vmem:[%s734 + $0x10] sm:%s725]
                %741 = vst [vmem:[%s735 + $0x10] sm:%s725] %v740
                %v742 = vld [vmem:[%s734 + $0x18] sm:%s725]
                %743 = vst [vmem:[%s735 + $0x18] sm:%s725] %v742
                %v744 = vld [vmem:[%s734 + $0x20] sm:%s725]
                %745 = vst [vmem:[%s735 + $0x20] sm:%s725] %v744
                %v746 = vld [vmem:[%s734 + $0x28] sm:%s725]
                %747 = vst [vmem:[%s735 + $0x28] sm:%s725] %v746
                %v748 = vld [vmem:[%s734 + $0x30] sm:%s725]
                %749 = vst [vmem:[%s735 + $0x30] sm:%s725] %v748
                %v750 = vld [vmem:[%s734 + $0x38] sm:%s725]
                %751 = vst [vmem:[%s735 + $0x38] sm:%s725] %v750
                %s752 = sadd.s32 1, %s733
                %p753 = scmp.ge.s32.totalorder %s752, %s726
                %s754 = scalar_select %p753, 0, %s752
                %s755 = smul.u32 %s754, 64
                %s756 = smul.u32 %s754, 64
                %s757 = scalar_lea.vmem %s608, %s755 [#allocation3]
                %s758 = scalar_lea.vmem %s716, %s756
              $region87: #{graphsage_forward.4} parent=81 // loop_footer
                %s730 = sadd.s32 %s728, 1
              $region88: #{graphsage_forward.4} parent=81 // loop_footer_branch
                %727 = sbr.rel target = $region84
              $region89: #{graphsage_forward.4} parent=81 // loop_exit
                _
              %s759 = sshrl.u32 %s712, 3
              %s760 = sand.u32 %s712, 7
              %s761 = smul.u32 %s759, 8
              %s762 = smul.u32 8, %s761
              %s763 = scalar_lea.vmem %s608, %s762 [#allocation3]
              %s764 = smul.u32 8, %s761
              %s765 = scalar_lea.vmem %s716, %s764
              // While loop
              $region90: #{graphsage_forward.4} parent=81 // loop_pre_header
                _
              $region91: #{graphsage_forward.4} parent=81 // loop_header
                %s767 = sphi 0, %s769
                %p768 = scmp.ge.s32.totalorder %s767, %s760
                %s772 = sphi 0, %s779
                %s773 = sphi %s763, %s782
                %s774 = sphi %s765, %s783
              $region92: #{graphsage_forward.4} parent=81 // loop_header_branch
                %771 = sbr.rel (%p768) target = $region96
              $region93: #{graphsage_forward.4} parent=81 // loop_body
                %v775 = vld [vmem:[%s773] sm:%s725]
                %776 = vst [vmem:[%s774] sm:%s725] %v775
                %s777 = sadd.s32 1, %s772
                %p778 = scmp.ge.s32.totalorder %s777, %s760
                %s779 = scalar_select %p778, 0, %s777
                %s780 = smul.u32 %s779, 8
                %s781 = smul.u32 %s779, 8
                %s782 = scalar_lea.vmem %s763, %s780 [#allocation3]
                %s783 = scalar_lea.vmem %s765, %s781
              $region94: #{graphsage_forward.4} parent=81 // loop_footer
                %s769 = sadd.s32 %s767, 1
              $region95: #{graphsage_forward.4} parent=81 // loop_footer_branch
                %766 = sbr.rel target = $region91
              $region96: #{graphsage_forward.4} parent=81 // loop_exit
                _
            $region82: #{graphsage_forward.4} parent=73 // pred_fallthru
              _
          $region74: #{graphsage_forward.4} parent=69 // pred_fallthru
            _
          %846 = vnop
        $region70: #{graphsage_forward.4} parent=35 // pred_fallthru
          _
      $region36: #{graphsage_forward.4} parent=5 // pred_fallthru
        _
      %p847 = scmp.le.s32.totalorder 2, %s12
      // Predicated region
      $region119: #{graphsage_forward.4} parent=5 // pred_check
        %p848 = pneg %p847
      $region120: #{graphsage_forward.4} parent=5 // pred_check_branch
        %850 = sbr.rel (%p848) target = $region122
      $region121: #{graphsage_forward.4} parent=5 // pred_region
        %s851 = ssub.s32 %s12, 2
        // Predicated region
        $region123: #{graphsage_forward.4} parent=121 // pred_check
          %p852 = pneg %p135
        $region124: #{graphsage_forward.4} parent=121 // pred_check_branch
          %854 = sbr.rel (%p852) target = $region126
        $region125: #{graphsage_forward.4} parent=121 // pred_region
          %s855 = sand.u32 %s120, 1
          %s856 = sand.u32 %s120, 1
          %s857 = smul.addr %s856, 128
          %s858 = scalar_lea.vmem [#allocation2], %s857
        $region126: #{graphsage_forward.4} parent=121 // pred_fallthru
          _
        // Predicated region
        $region127: #{graphsage_forward.4} parent=121 // pred_check
          %p859 = pneg %p161
        $region128: #{graphsage_forward.4} parent=121 // pred_check_branch
          %861 = sbr.rel (%p859) target = $region130
        $region129: #{graphsage_forward.4} parent=121 // pred_region
          %s862 = sand.u32 %s146, 1
          %s863 = sand.u32 %s146, 1
          %s864 = smul.addr %s863, 64
          %s865 = scalar_lea.vmem [#allocation3], %s864
        $region130: #{graphsage_forward.4} parent=121 // pred_fallthru
          _
      $region122: #{graphsage_forward.4} parent=5 // pred_fallthru
        _
    $region6: #{graphsage_forward.4} parent=1 // loop_footer
      %s16 = sadd.s32 1, %s12
    $region7: #{graphsage_forward.4} parent=1 // loop_footer_branch
      %11 = sbr.rel target = $region3
    $region8: #{graphsage_forward.4} parent=1 // loop_exit
      _

// kernel: graphsage_forward.5
$region0: #{graphsage_forward.5}
  #allocation0 [shape = 'u32[]', space=smem, size = 0x4, offset = 0x4, fixed_abs, tag = 'smem constant byte address 0x4 - core index']
  #allocation1 [shape = 'u32[144,128]{1,0:T(1,128)}', space=vmem, size = 0x12000, scoped, tag = 'internal scratch']
  #allocation2 [shape = 'f32[1,1]{1,0:T(1,128)S(1)}', space=vmem, size = 0x200, scoped, tag = 'scoped memory for graphsage_forward.5']
  %s0 = inlined_call_operand.vmem [shape: bf16[240,16], index: 0, kind: input, shape index: {}]
  %s1 = inlined_call_operand.vmem [shape: f32[240,16], index: 1, kind: input, shape index: {}]
  %s2 = inlined_call_operand.vmem [shape: f32[16,1], index: 2, kind: input, shape index: {}]
  %s3 = inlined_call_operand.<no memory space> [shape: f32[1,1], index: 3, kind: input, shape index: {}]
  %s4 = inlined_call_operand.vmem [shape: f32[240,240], index: 4, kind: input, shape index: {}]
  %s5 = inlined_call_operand.vmem [shape: f32[240,16], index: 5, kind: output, shape index: {0}]
  %s6 = inlined_call_operand.vmem [shape: f32[240,1], index: 6, kind: output, shape index: {1}]
  %7 = xla_tuple %s5, %s6
  %s8 = sld [smem:[#allocation0]]
  $region157: #{graphsage_forward.5} parent=0
    _
  %s10 = ssub.s32 1, %s8
  %s11 = scalar_select 0, %s10, %s8
  %v12 = vstv %s3
  %13 = vst [vmem:[#allocation2] sm:$0x1] %v12
  $region1: #{graphsage_forward.5} parent=0
    #allocation3 [shape = 'u8[65536]{0}', space=vmem, size = 0x10000, scoped, tag = 'output window, operand 0']
    #allocation4 [shape = 'u8[65536]{0}', space=vmem, size = 0x10000, scoped, tag = 'output window, operand 1']
    loop: start=0, step=1, limit=6
    $region2: #{graphsage_forward.5} parent=1 // loop_pre_header
      _
    $region3: #{graphsage_forward.5} parent=1 // loop_header
      %s15 = sphi 0, %s19
      %p16 = scmp.ge.s32.totalorder %s15, 6
      %s23 = sphi 0, %s23
      %s25 = sphi 0, %s23
      %s26 = sphi 0, %s25
      %s40 = sphi 0, %s26
      %s46 = sphi 0, %s48
      %s49 = sphi 0, %s46
      %s50 = sphi 0, %s49
      %s66 = sphi 0, %s50
      %s70 = sphi 0, %s70
      %s72 = sphi 0, %s70
      %s73 = sphi 0, %s72
      %s87 = sphi 0, %s73
      %s91 = sphi 0, %s91
      %s93 = sphi 0, %s91
      %s94 = sphi 0, %s93
      %s108 = sphi 0, %s94
      %s114 = sphi 0, %s116
      %s117 = sphi 0, %s114
      %s118 = sphi 0, %s117
      %s134 = sphi 0, %s118
      %s140 = sphi 0, %s142
      %s143 = sphi 0, %s140
      %s144 = sphi 0, %s143
      %s160 = sphi 0, %s144
      %s166 = sphi 0, %s168
      %s169 = sphi 0, %s166
      %s170 = sphi 0, %s169
      %s186 = sphi 0, %s170
    $region4: #{graphsage_forward.5} parent=1 // loop_header_branch
      %18 = sbr.rel (%p16) target = $region8
    $region5: #{graphsage_forward.5} parent=1 // loop_body
      %s20 = ssub.s32 %s15, 1
      %s21 = ssub.s32 %s15, 2
      %s22 = sadd.s32 %s15, 1
      %s24 = sadd.s32 %s23, 1
      %p27 = scmp.eq.s32.totalorder %s15, 3
      %p28 = scmp.ne.s32.totalorder %s23, %s25
      %p29 = scmp.eq.s32.totalorder %s15, 0
      %p30 = por %p28, %p29
      %p31 = scmp.ne.s32.totalorder %s23, %s25
      %p32 = scmp.eq.s32.totalorder %s20, 3
      %p33 = por %p31, %p32
      %p34 = scmp.ne.s32.totalorder %s25, %s26
      %p35 = scmp.eq.s32.totalorder %s20, 0
      %p36 = por %p34, %p35
      %p37 = scmp.ne.s32.totalorder %s25, %s26
      %p38 = scmp.eq.s32.totalorder %s21, 3
      %p39 = por %p37, %p38
      %p41 = scmp.ne.s32.totalorder %s26, %s40
      %p42 = scmp.eq.s32.totalorder %s21, 0
      %p43 = por %p41, %p42
      %s44 = ssub.s32 %s15, %s22
      %p45 = scmp.eq.s32.totalorder %s44, 0
      %s47 = sadd.s32 %s46, 1
      %s48 = scalar_select %p45, %s46, %s47
      %p51 = pneg %p45
      %p52 = scmp.eq.s32.totalorder %s15, 3
      %p53 = por %p51, %p52
      %p54 = scmp.ne.s32.totalorder %s46, %s49
      %p55 = scmp.eq.s32.totalorder %s15, 0
      %p56 = por %p54, %p55
      %p57 = scmp.ne.s32.totalorder %s46, %s49
      %p58 = scmp.eq.s32.totalorder %s20, 3
      %p59 = por %p57, %p58
      %p60 = scmp.ne.s32.totalorder %s49, %s50
      %p61 = scmp.eq.s32.totalorder %s20, 0
      %p62 = por %p60, %p61
      %p63 = scmp.ne.s32.totalorder %s49, %s50
      %p64 = scmp.eq.s32.totalorder %s21, 3
      %p65 = por %p63, %p64
      %p67 = scmp.ne.s32.totalorder %s50, %s66
      %p68 = scmp.eq.s32.totalorder %s21, 0
      %p69 = por %p67, %p68
      %s71 = sadd.s32 %s70, 1
      %p74 = scmp.eq.s32.totalorder %s15, 3
      %p75 = scmp.ne.s32.totalorder %s70, %s72
      %p76 = scmp.eq.s32.totalorder %s15, 0
      %p77 = por %p75, %p76
      %p78 = scmp.ne.s32.totalorder %s70, %s72
      %p79 = scmp.eq.s32.totalorder %s20, 3
      %p80 = por %p78, %p79
      %p81 = scmp.ne.s32.totalorder %s72, %s73
      %p82 = scmp.eq.s32.totalorder %s20, 0
      %p83 = por %p81, %p82
      %p84 = scmp.ne.s32.totalorder %s72, %s73
      %p85 = scmp.eq.s32.totalorder %s21, 3
      %p86 = por %p84, %p85
      %p88 = scmp.ne.s32.totalorder %s73, %s87
      %p89 = scmp.eq.s32.totalorder %s21, 0
      %p90 = por %p88, %p89
      %s92 = sadd.s32 %s91, 1
      %p95 = scmp.eq.s32.totalorder %s15, 3
      %p96 = scmp.ne.s32.totalorder %s91, %s93
      %p97 = scmp.eq.s32.totalorder %s15, 0
      %p98 = por %p96, %p97
      %p99 = scmp.ne.s32.totalorder %s91, %s93
      %p100 = scmp.eq.s32.totalorder %s20, 3
      %p101 = por %p99, %p100
      %p102 = scmp.ne.s32.totalorder %s93, %s94
      %p103 = scmp.eq.s32.totalorder %s20, 0
      %p104 = por %p102, %p103
      %p105 = scmp.ne.s32.totalorder %s93, %s94
      %p106 = scmp.eq.s32.totalorder %s21, 3
      %p107 = por %p105, %p106
      %p109 = scmp.ne.s32.totalorder %s94, %s108
      %p110 = scmp.eq.s32.totalorder %s21, 0
      %p111 = por %p109, %p110
      %s112 = ssub.s32 %s15, %s22
      %p113 = scmp.eq.s32.totalorder %s112, 0
      %s115 = sadd.s32 %s114, 1
      %s116 = scalar_select %p113, %s114, %s115
      %p119 = pneg %p113
      %p120 = scmp.eq.s32.totalorder %s15, 3
      %p121 = por %p119, %p120
      %p122 = scmp.ne.s32.totalorder %s114, %s117
      %p123 = scmp.eq.s32.totalorder %s15, 0
      %p124 = por %p122, %p123
      %p125 = scmp.ne.s32.totalorder %s114, %s117
      %p126 = scmp.eq.s32.totalorder %s20, 3
      %p127 = por %p125, %p126
      %p128 = scmp.ne.s32.totalorder %s117, %s118
      %p129 = scmp.eq.s32.totalorder %s20, 0
      %p130 = por %p128, %p129
      %p131 = scmp.ne.s32.totalorder %s117, %s118
      %p132 = scmp.eq.s32.totalorder %s21, 3
      %p133 = por %p131, %p132
      %p135 = scmp.ne.s32.totalorder %s118, %s134
      %p136 = scmp.eq.s32.totalorder %s21, 0
      %p137 = por %p135, %p136
      %s138 = ssub.s32 %s15, %s22
      %p139 = scmp.eq.s32.totalorder %s138, 0
      %s141 = sadd.s32 %s140, 1
      %s142 = scalar_select %p139, %s140, %s141
      %p145 = pneg %p139
      %p146 = scmp.eq.s32.totalorder %s15, 3
      %p147 = por %p145, %p146
      %p148 = scmp.ne.s32.totalorder %s140, %s143
      %p149 = scmp.eq.s32.totalorder %s15, 0
      %p150 = por %p148, %p149
      %p151 = scmp.ne.s32.totalorder %s140, %s143
      %p152 = scmp.eq.s32.totalorder %s20, 3
      %p153 = por %p151, %p152
      %p154 = scmp.ne.s32.totalorder %s143, %s144
      %p155 = scmp.eq.s32.totalorder %s20, 0
      %p156 = por %p154, %p155
      %p157 = scmp.ne.s32.totalorder %s143, %s144
      %p158 = scmp.eq.s32.totalorder %s21, 3
      %p159 = por %p157, %p158
      %p161 = scmp.ne.s32.totalorder %s144, %s160
      %p162 = scmp.eq.s32.totalorder %s21, 0
      %p163 = por %p161, %p162
      %s164 = ssub.s32 %s15, %s22
      %p165 = scmp.eq.s32.totalorder %s164, 0
      %s167 = sadd.s32 %s166, 1
      %s168 = scalar_select %p165, %s166, %s167
      %p171 = pneg %p165
      %p172 = scmp.eq.s32.totalorder %s15, 3
      %p173 = por %p171, %p172
      %p174 = scmp.ne.s32.totalorder %s166, %s169
      %p175 = scmp.eq.s32.totalorder %s15, 0
      %p176 = por %p174, %p175
      %p177 = scmp.ne.s32.totalorder %s166, %s169
      %p178 = scmp.eq.s32.totalorder %s20, 3
      %p179 = por %p177, %p178
      %p180 = scmp.ne.s32.totalorder %s169, %s170
      %p181 = scmp.eq.s32.totalorder %s20, 0
      %p182 = por %p180, %p181
      %p183 = scmp.ne.s32.totalorder %s169, %s170
      %p184 = scmp.eq.s32.totalorder %s21, 3
      %p185 = por %p183, %p184
      %p187 = scmp.ne.s32.totalorder %s170, %s186
      %p188 = scmp.eq.s32.totalorder %s21, 0
      %p189 = por %p187, %p188
      %p190 = scmp.le.s32.totalorder 1, %s15
      %p191 = scmp.lt.s32.totalorder %s15, 5
      %p192 = pnand %p190, %p191
      %p193 = pneg %p192
      // Predicated region
      $region9: #{graphsage_forward.5} parent=5 // pred_check
        _
      $region10: #{graphsage_forward.5} parent=5 // pred_check_branch
        %195 = sbr.rel (%p192) target = $region12
      $region11: #{graphsage_forward.5} parent=5 // pred_region
        %s196 = ssub.s32 %s15, 1
        // Predicated region
        $region13: #{graphsage_forward.5} parent=11 // pred_check
          %p197 = pneg %p36
        $region14: #{graphsage_forward.5} parent=11 // pred_check_branch
          %199 = sbr.rel (%p197) target = $region16
        $region15: #{graphsage_forward.5} parent=11 // pred_region
          _
        $region16: #{graphsage_forward.5} parent=11 // pred_fallthru
          _
        // Predicated region
        $region17: #{graphsage_forward.5} parent=11 // pred_check
          %p200 = pneg %p83
        $region18: #{graphsage_forward.5} parent=11 // pred_check_branch
          %202 = sbr.rel (%p200) target = $region20
        $region19: #{graphsage_forward.5} parent=11 // pred_region
          _
        $region20: #{graphsage_forward.5} parent=11 // pred_fallthru
          _
        // Predicated region
        $region21: #{graphsage_forward.5} parent=11 // pred_check
          %p203 = pneg %p104
        $region22: #{graphsage_forward.5} parent=11 // pred_check_branch
          %205 = sbr.rel (%p203) target = $region24
        $region23: #{graphsage_forward.5} parent=11 // pred_region
          _
        $region24: #{graphsage_forward.5} parent=11 // pred_fallthru
          _
      $region12: #{graphsage_forward.5} parent=5 // pred_fallthru
        _
      %p206 = scmp.lt.s32.totalorder %s15, 4
      // Predicated region
      $region25: #{graphsage_forward.5} parent=5 // pred_check
        %p207 = pneg %p206
      $region26: #{graphsage_forward.5} parent=5 // pred_check_branch
        %209 = sbr.rel (%p207) target = $region28
      $region27: #{graphsage_forward.5} parent=5 // pred_region
        // Predicated region
        $region29: #{graphsage_forward.5} parent=27 // pred_check
          %p210 = pneg %p56
        $region30: #{graphsage_forward.5} parent=27 // pred_check_branch
          %212 = sbr.rel (%p210) target = $region32
        $region31: #{graphsage_forward.5} parent=27 // pred_region
          %s213 = smul.u32 8, %s15
          %s214 = ssub.s32 30, %s213
          %p215 = scmp.lt.s32.totalorder %s214, 8
          %s216 = scalar_select %p215, %s214, 8
          %s217 = smul.u32 128, %s216
          %p218 = scmp.lt.s32.totalorder %s213, 29
          %s219 = scalar_select %p218, %s213, 29
          %s220 = smul.addr %s219, 8
          %s221 = scalar_lea.vmem %s1, %s220
          %s222 = smul.u32 8, %s15
          %s223 = ssub.s32 30, %s222
          %p224 = scmp.lt.s32.totalorder %s223, 8
          %s225 = scalar_select %p224, %s223, 8
          %s226 = smul.u32 128, %s225
        $region32: #{graphsage_forward.5} parent=27 // pred_fallthru
          _
        // Predicated region
        $region33: #{graphsage_forward.5} parent=27 // pred_check
          %p227 = pneg %p124
        $region34: #{graphsage_forward.5} parent=27 // pred_check_branch
          %229 = sbr.rel (%p227) target = $region36
        $region35: #{graphsage_forward.5} parent=27 // pred_region
          %s230 = smul.u32 8, %s15
          %s231 = ssub.s32 30, %s230
          %p232 = scmp.lt.s32.totalorder %s231, 8
          %s233 = scalar_select %p232, %s231, 8
          %s234 = smul.u32 128, %s233
          %s235 = smul.u32 %s234, 2
          %p236 = scmp.lt.s32.totalorder %s230, 29
          %s237 = scalar_select %p236, %s230, 29
          %s238 = smul.addr %s237, 2
          %s239 = smul.addr %s238, 8
          %s240 = scalar_lea.vmem %s4, %s239
          %s241 = smul.u32 8, %s15
          %s242 = ssub.s32 30, %s241
          %p243 = scmp.lt.s32.totalorder %s242, 8
          %s244 = scalar_select %p243, %s242, 8
          %s245 = smul.u32 128, %s244
          %s246 = smul.u32 %s245, 2
        $region36: #{graphsage_forward.5} parent=27 // pred_fallthru
          _
      $region28: #{graphsage_forward.5} parent=5 // pred_fallthru
        _
      %p247 = scmp.le.s32.totalorder 1, %s15
      %p248 = scmp.lt.s32.totalorder %s15, 5
      %p249 = pnand %p247, %p248
      %p250 = pneg %p249
      // Predicated region
      $region37: #{graphsage_forward.5} parent=5 // pred_check
        _
      $region38: #{graphsage_forward.5} parent=5 // pred_check_branch
        %252 = sbr.rel (%p249) target = $region40
      $region39: #{graphsage_forward.5} parent=5 // pred_region
        %s253 = ssub.s32 %s15, 1
        %p254 = pneg %p36
        %p255 = pneg %p33
        %s256 = smul.u32 8, %s20
        %s257 = ssub.s32 30, %s256
        %p258 = scmp.lt.s32.totalorder %s257, 8
        %s259 = scalar_select %p258, %s257, 8
        %s260 = smul.u32 128, %s259
        %p261 = scmp.lt.s32.totalorder %s256, 29
        %s262 = scalar_select %p261, %s256, 29
        %s263 = smul.addr %s262, 8
        %s264 = scalar_lea.vmem %s1, %s263
        %p265 = pneg %p62
        %p266 = pneg %p59
        %p267 = pneg %p83
        %p268 = pneg %p80
        %p269 = pneg %p104
        %p270 = pneg %p101
        %s271 = smul.u32 8, %s20
        %s272 = ssub.s32 30, %s271
        %p273 = scmp.lt.s32.totalorder %s272, 8
        %s274 = scalar_select %p273, %s272, 8
        %s275 = smul.u32 128, %s274
        %s276 = smul.u32 %s275, 2
        %p277 = scmp.lt.s32.totalorder %s271, 29
        %s278 = scalar_select %p277, %s271, 29
        %s279 = smul.addr %s278, 2
        %s280 = smul.addr %s279, 8
        %s281 = scalar_lea.vmem %s4, %s280
        %p282 = pneg %p130
        %p283 = pneg %p127
        %p284 = pneg %p156
        %p285 = pneg %p153
        %s286 = sand.u32 %s143, 1
        %s287 = sand.u32 %s143, 1
        %s288 = smul.addr %s287, 64
        %s289 = scalar_lea.vmem [#allocation3], %s288
        %p290 = pneg %p182
        %p291 = pneg %p179
        %s292 = sand.u32 %s169, 1
        %s293 = sand.u32 %s169, 1
        %s294 = smul.addr %s293, 64
        %s295 = scalar_lea.vmem [#allocation4], %s294
        %s296 = smul.u32 8, %s20
        %s297 = ssub.s32 30, %s296
        %p298 = scmp.lt.s32.totalorder %s297, 8
        %s299 = scalar_select %p298, %s297, 8
        %s300 = smul.u32 128, %s299
        %p301 = scmp.lt.s32.totalorder %s296, 29
        %s302 = scalar_select %p301, %s296, 29
        %s303 = smul.addr %s302, 8
        %s304 = scalar_lea.vmem %s1, %s303
        %s305 = smul.u32 8, %s20
        %s306 = ssub.s32 30, %s305
        %p307 = scmp.lt.s32.totalorder %s306, 8
        %s308 = scalar_select %p307, %s306, 8
        %s309 = smul.u32 128, %s308
        %s310 = smul.u32 8, %s20
        %s311 = ssub.s32 30, %s310
        %p312 = scmp.lt.s32.totalorder %s311, 8
        %s313 = scalar_select %p312, %s311, 8
        %s314 = smul.u32 128, %s313
        %s315 = smul.u32 %s314, 2
        %p316 = scmp.lt.s32.totalorder %s310, 29
        %s317 = scalar_select %p316, %s310, 29
        %s318 = smul.addr %s317, 2
        %s319 = smul.addr %s318, 8
        %s320 = scalar_lea.vmem %s4, %s319
        %s321 = smul.u32 8, %s20
        %s322 = ssub.s32 30, %s321
        %p323 = scmp.lt.s32.totalorder %s322, 8
        %s324 = scalar_select %p323, %s322, 8
        %s325 = smul.u32 128, %s324
        %s326 = smul.u32 %s325, 2
        %s327 = smul.u32 8, %s20
        %s328 = ssub.s32 30, %s327
        %p329 = scmp.lt.s32.totalorder %s328, 8
        %s330 = scalar_select %p329, %s328, 8
        %s331 = smul.u32 128, %s330
        %s332 = smul.u32 8, %s20
        %s333 = ssub.s32 30, %s332
        %p334 = scmp.lt.s32.totalorder %s333, 8
        %s335 = scalar_select %p334, %s333, 8
        %s336 = smul.u32 128, %s335
        %v338 = vld [vmem:[%s320] sm:$0xff]
        %v339 = vld [vmem:[%s320 + $0x8] sm:$0xff]
        %v340 = vld [vmem:[%s320 + $0x10] sm:$0xff]
        %v341 = vld [vmem:[%s320 + $0x18] sm:$0xff]
        %v342 = vld [vmem:[%s320 + $0x20] sm:$0xff]
        %v343 = vld [vmem:[%s320 + $0x28] sm:$0xff]
        %v344 = vld [vmem:[%s320 + $0x30] sm:$0xff]
        %v345 = vld [vmem:[%s320 + $0x38] sm:$0xff]
        %v346 = vld [vmem:[%s320 + $0x40] sm:$0xff]
        %v347 = vld [vmem:[%s320 + $0x48] sm:$0xff]
        %v348 = vld [vmem:[%s320 + $0x50] sm:$0xff]
        %v349 = vld [vmem:[%s320 + $0x58] sm:$0xff]
        %v350 = vld [vmem:[%s320 + $0x60] sm:$0xff]
        %v351 = vld [vmem:[%s320 + $0x68] sm:$0xff]
        %v352 = vld [vmem:[%s320 + $0x70] sm:$0xff]
        %v353 = vld [vmem:[%s320 + $0x78] sm:$0xff]
        %v354 = vpack.c.bf16 %v340, %v338
        %v355 = vpack.c.bf16 %v341, %v339
        %v356 = vpack.c.bf16 %v344, %v342
        %v357 = vpack.c.bf16 %v345, %v343
        %v358 = vpack.c.bf16 %v348, %v346
        %v359 = vpack.c.bf16 %v349, %v347
        %v360 = vpack.c.bf16 %v352, %v350
        %v361 = vpack.c.bf16 %v353, %v351
        %v362 = vld [vmem:[%s0] sm:$0xf]
        %v363 = vld [vmem:[%s0 + $0x4] sm:$0xf]
        %v364 = vld [vmem:[%s0 + $0x8] sm:$0xf]
        %v365 = vld [vmem:[%s0 + $0xc] sm:$0xf]
        %v366 = vld [vmem:[%s0 + $0x10] sm:$0xf]
        %v367 = vld [vmem:[%s0 + $0x14] sm:$0xf]
        %v368 = vld [vmem:[%s0 + $0x18] sm:$0xf]
        %v369 = vld [vmem:[%s0 + $0x1c] sm:$0xf]
        %v370 = vld [vmem:[%s0 + $0x20] sm:$0xf]
        %v371 = vld [vmem:[%s0 + $0x24] sm:$0xf]
        %v372 = vld [vmem:[%s0 + $0x28] sm:$0xf]
        %v373 = vld [vmem:[%s0 + $0x2c] sm:$0xf]
        %v374 = vld [vmem:[%s0 + $0x30] sm:$0xf]
        %v375 = vld [vmem:[%s0 + $0x34] sm:$0xf]
        %v376 = vld [vmem:[%s0 + $0x38] sm:$0xf]
        %v377 = vld [vmem:[%s0 + $0x3c] sm:$0xf]
        %v378 = vld [vmem:[%s0 + $0x40] sm:$0xf]
        %v379 = vld [vmem:[%s0 + $0x44] sm:$0xf]
        %v380 = vld [vmem:[%s0 + $0x48] sm:$0xf]
        %v381 = vld [vmem:[%s0 + $0x4c] sm:$0xf]
        %v382 = vld [vmem:[%s0 + $0x50] sm:$0xf]
        %v383 = vld [vmem:[%s0 + $0x54] sm:$0xf]
        %v384 = vld [vmem:[%s0 + $0x58] sm:$0xf]
        %v385 = vld [vmem:[%s0 + $0x5c] sm:$0xf]
        %v386 = vld [vmem:[%s0 + $0x60] sm:$0xf]
        %v387 = vld [vmem:[%s0 + $0x64] sm:$0xf]
        %v388 = vld [vmem:[%s0 + $0x68] sm:$0xf]
        %v389 = vld [vmem:[%s0 + $0x6c] sm:$0xf]
        %v390 = vld [vmem:[%s0 + $0x70] sm:$0xf]
        %v391 = vld [vmem:[%s0 + $0x74] sm:$0xf]
        %v392 = vld [vmem:[%s304] sm:$0xff]
        %v393 = vld [vmem:[%s304 + $0x8] sm:$0xff]
        %v394 = vld [vmem:[%s304 + $0x10] sm:$0xff]
        %v395 = vld [vmem:[%s304 + $0x18] sm:$0xff]
        %v396 = vld [vmem:[%s304 + $0x20] sm:$0xff]
        %v397 = vld [vmem:[%s304 + $0x28] sm:$0xff]
        %v398 = vld [vmem:[%s304 + $0x30] sm:$0xff]
        %v399 = vld [vmem:[%s304 + $0x38] sm:$0xff]
        %v430 = vunpack.c.l.b16 %v362
        %v431 = vunpack.c.l.b16 %v363
        %v432 = vunpack.c.l.b16 %v364
        %v433 = vunpack.c.l.b16 %v365
        %v434 = vunpack.c.l.b16 %v366
        %v435 = vunpack.c.l.b16 %v367
        %v436 = vunpack.c.l.b16 %v368
        %v437 = vunpack.c.l.b16 %v369
        %v438 = vunpack.c.l.b16 %v370
        %v439 = vunpack.c.l.b16 %v371
        %v440 = vunpack.c.l.b16 %v372
        %v441 = vunpack.c.l.b16 %v373
        %v442 = vunpack.c.l.b16 %v374
        %v443 = vunpack.c.l.b16 %v375
        %v444 = vunpack.c.l.b16 %v376
        %v445 = vunpack.c.l.b16 %v377
        %v446 = vunpack.c.l.b16 %v378
        %v447 = vunpack.c.l.b16 %v379
        %v448 = vunpack.c.l.b16 %v380
        %v449 = vunpack.c.l.b16 %v381
        %v450 = vunpack.c.l.b16 %v382
        %v451 = vunpack.c.l.b16 %v383
        %v452 = vunpack.c.l.b16 %v384
        %v453 = vunpack.c.l.b16 %v385
        %v454 = vunpack.c.l.b16 %v386
        %v455 = vunpack.c.l.b16 %v387
        %v456 = vunpack.c.l.b16 %v388
        %v457 = vunpack.c.l.b16 %v389
        %v458 = vunpack.c.l.b16 %v390
        %v459 = vunpack.c.l.b16 %v391
        %v460 = vpack.c.b16 %v431, %v430
        %v461 = vpack.c.b16 %v433, %v432
        %v462 = vpack.c.b16 %v435, %v434
        %v463 = vpack.c.b16 %v437, %v436
        %v464 = vpack.c.b16 %v439, %v438
        %v465 = vpack.c.b16 %v441, %v440
        %v466 = vpack.c.b16 %v443, %v442
        %v467 = vpack.c.b16 %v445, %v444
        %v468 = vpack.c.b16 %v447, %v446
        %v469 = vpack.c.b16 %v449, %v448
        %v470 = vpack.c.b16 %v451, %v450
        %v471 = vpack.c.b16 %v453, %v452
        %v472 = vpack.c.b16 %v455, %v454
        %v473 = vpack.c.b16 %v457, %v456
        %v474 = vpack.c.b16 %v459, %v458
        %vm490 = vcmask 916480
        %v492 = vsel %vm490, %v355, 0
        %v495 = vsel %vm490, %v357, 0
        %v498 = vsel %vm490, %v359, 0
        %v501 = vsel %vm490, %v361, 0
        %503 = vmatprep.subr.bf16.mxu0 0
        %504 = vmatpush1.bf16.msra.mxu0 %v467
        %505 = vmatprep.subr.bf16.mxu0 0
        %506 = vmatpush1.bf16.msra.mxu0 %v466
        %507 = vmatprep.subr.bf16.mxu0 0
        %508 = vmatpush1.bf16.msra.mxu0 %v465
        %509 = vmatprep.subr.bf16.mxu0 0
        %510 = vmatpush1.bf16.msra.mxu0 %v464
        %511 = vmatprep.subr.bf16.mxu0 0
        %512 = vmatpush1.bf16.msra.mxu0 %v463
        %513 = vmatprep.subr.bf16.mxu0 0
        %514 = vmatpush1.bf16.msra.mxu0 %v462
        %515 = vmatprep.subr.bf16.mxu0 0
        %516 = vmatpush1.bf16.msra.mxu0 %v461
        %517 = vmatprep.subr.bf16.mxu0 0
        %518 = vmatpush1.bf16.msra.mxu0 %v460
        %519 = vmatprep.subr.bf16.mxu0 0
        %520 = vmatpush2.bf16.msra.mxu0 0
        %521 = vmatprep.subr.bf16.mxu0 0
        %522 = vmatpush2.bf16.msra.mxu0 %v474
        %523 = vmatprep.subr.bf16.mxu0 0
        %524 = vmatpush2.bf16.msra.mxu0 %v473
        %525 = vmatprep.subr.bf16.mxu0 0
        %526 = vmatpush2.bf16.msra.mxu0 %v472
        %527 = vmatprep.subr.bf16.mxu0 0
        %528 = vmatpush2.bf16.msra.mxu0 %v471
        %529 = vmatprep.subr.bf16.mxu0 0
        %530 = vmatpush2.bf16.msra.mxu0 %v470
        %531 = vmatprep.subr.bf16.mxu0 0
        %532 = vmatpush2.bf16.msra.mxu0 %v469
        %533 = vmatprep.subr.bf16.mxu0 0
        %534 = vmatpush2.bf16.msra.mxu0 %v468
        %535 = vmatprep.mubr.bf16.mxu0 %v492
        %536 = vmatmul.mubr.bf16.gmra.mxu0 %v354
        %v537 = vpop.f32.mrf.mxu0
        %v538 = vadd.f32 %v392, %v537
        %v539 = vpop.f32.mrf.mxu0
        %v540 = vpop.f32.mrf.mxu0
        %v541 = vadd.f32 %v393, %v540
        %v542 = vpop.f32.mrf.mxu0
        %543 = vmatprep.mubr.bf16.mxu0 %v495
        %544 = vmatmul.mubr.bf16.gmra.mxu0 %v356
        %v545 = vpop.f32.mrf.mxu0
        %v546 = vadd.f32 %v394, %v545
        %v547 = vpop.f32.mrf.mxu0
        %v548 = vpop.f32.mrf.mxu0
        %v549 = vadd.f32 %v395, %v548
        %v550 = vpop.f32.mrf.mxu0
        %551 = vmatprep.mubr.bf16.mxu0 %v498
        %552 = vmatmul.mubr.bf16.gmra.mxu0 %v358
        %v553 = vpop.f32.mrf.mxu0
        %v554 = vadd.f32 %v396, %v553
        %v555 = vpop.f32.mrf.mxu0
        %v556 = vpop.f32.mrf.mxu0
        %v557 = vadd.f32 %v397, %v556
        %v558 = vpop.f32.mrf.mxu0
        %559 = vmatprep.mubr.bf16.mxu0 %v501
        %560 = vmatmul.mubr.bf16.gmra.mxu0 %v360
        %v561 = vpop.f32.mrf.mxu0
        %v562 = vadd.f32 %v398, %v561
        %v563 = vpop.f32.mrf.mxu0
        %v564 = vpop.f32.mrf.mxu0
        %v565 = vadd.f32 %v399, %v564
        %v566 = vpop.f32.mrf.mxu0
        %567 = vdwg.mxu0
        %v568 = vmax.f32 %v538, 0.0
        %v569 = vmax.f32 %v541, 0.0
        %v570 = vmax.f32 %v546, 0.0
        %v571 = vmax.f32 %v549, 0.0
        %v572 = vmax.f32 %v554, 0.0
        %v573 = vmax.f32 %v557, 0.0
        %v574 = vmax.f32 %v562, 0.0
        %v575 = vmax.f32 %v565, 0.0
        %vm576 = vcmask 130048
        %577 = vst.msk [vmem:[%s289] sm:$0xff] %vm576, %v568
        %578 = vst.msk [vmem:[%s289 + $0x8] sm:$0xff] %vm576, %v569
        %579 = vst.msk [vmem:[%s289 + $0x10] sm:$0xff] %vm576, %v570
        %580 = vst.msk [vmem:[%s289 + $0x18] sm:$0xff] %vm576, %v571
        %581 = vst.msk [vmem:[%s289 + $0x20] sm:$0xff] %vm576, %v572
        %582 = vst.msk [vmem:[%s289 + $0x28] sm:$0xff] %vm576, %v573
        %583 = vst.msk [vmem:[%s289 + $0x30] sm:$0xff] %vm576, %v574
        %584 = vst.msk [vmem:[%s289 + $0x38] sm:$0xff] %vm576, %v575
        %v585 = vld [vmem:[%s2] sm:$0xff]
        %v586 = vld [vmem:[%s2 + $0x8] sm:$0xff]
        %v587 = vld [vmem:[#allocation2] sm:$0x1]
        %v589 = vlaneseq
        %v590 = vshrl.u32 %v589, 7
        %v591 = vsub.s32 0, %v590
        %v592 = vrot.slane %v587, %v591
        %v595 = vsel %vm576, %v568, 0
        %v598 = vsel %vm576, %v569, 0
        %v601 = vsel %vm576, %v570, 0
        %v604 = vsel %vm576, %v571, 0
        %v607 = vsel %vm576, %v572, 0
        %v610 = vsel %vm576, %v573, 0
        %v613 = vsel %vm576, %v574, 0
        %v616 = vsel %vm576, %v575, 0
        %618 = vmatprep.subr.mxu0 0.0
        %619 = vmatpush1.msra.mxu0 0.0
        %620 = vmatprep.subr.mxu0 0.0
        %621 = vmatpush1.msra.mxu0 0.0
        %622 = vmatprep.subr.mxu0 0.0
        %623 = vmatpush1.msra.mxu0 0.0
        %624 = vmatprep.subr.mxu0 0.0
        %625 = vmatpush1.msra.mxu0 0.0
        %626 = vmatprep.subr.mxu0 0.0
        %627 = vmatpush1.msra.mxu0 0.0
        %628 = vmatprep.subr.mxu0 0.0
        %629 = vmatpush1.msra.mxu0 0.0
        %630 = vmatprep.subr.mxu0 0.0
        %631 = vmatpush1.msra.mxu0 0.0
        %632 = vmatprep.subr.mxu0 0.0
        %633 = vmatpush1.msra.mxu0 0.0
        %634 = vmatprep.subr.mxu0 0.0
        %635 = vmatpush1.msra.mxu0 0.0
        %636 = vmatprep.subr.mxu0 0.0
        %637 = vmatpush1.msra.mxu0 0.0
        %638 = vmatprep.subr.mxu0 0.0
        %639 = vmatpush1.msra.mxu0 0.0
        %640 = vmatprep.subr.mxu0 0.0
        %641 = vmatpush1.msra.mxu0 0.0
        %642 = vmatprep.subr.mxu0 0.0
        %643 = vmatpush1.msra.mxu0 0.0
        %644 = vmatprep.subr.mxu0 0.0
        %645 = vmatpush1.msra.mxu0 0.0
        %646 = vmatprep.subr.mxu0 0.0
        %647 = vmatpush1.msra.mxu0 %v586
        %648 = vmatprep.subr.mxu0 0.0
        %649 = vmatpush1.msra.mxu0 %v585
        %650 = vmatprep.subr.mxu0 0.0
        %651 = vmatpush2.msra.mxu0 0.0
        %652 = vmatprep.subr.mxu0 0.0
        %653 = vmatpush2.msra.mxu0 0.0
        %654 = vmatprep.subr.mxu0 0.0
        %655 = vmatpush2.msra.mxu0 0.0
        %656 = vmatprep.subr.mxu0 0.0
        %657 = vmatpush2.msra.mxu0 0.0
        %658 = vmatprep.subr.mxu0 0.0
        %659 = vmatpush2.msra.mxu0 0.0
        %660 = vmatprep.subr.mxu0 0.0
        %661 = vmatpush2.msra.mxu0 0.0
        %662 = vmatprep.subr.mxu0 0.0
        %663 = vmatpush2.msra.mxu0 0.0
        %664 = vmatprep.subr.mxu0 0.0
        %665 = vmatpush2.msra.mxu0 0.0
        %666 = vmatprep.subr.mxu0 0.0
        %667 = vmatpush2.msra.mxu0 0.0
        %668 = vmatprep.subr.mxu0 0.0
        %669 = vmatpush2.msra.mxu0 0.0
        %670 = vmatprep.subr.mxu0 0.0
        %671 = vmatpush2.msra.mxu0 0.0
        %672 = vmatprep.subr.mxu0 0.0
        %673 = vmatpush2.msra.mxu0 0.0
        %674 = vmatprep.subr.mxu0 0.0
        %675 = vmatpush2.msra.mxu0 0.0
        %676 = vmatprep.subr.mxu0 0.0
        %677 = vmatpush2.msra.mxu0 0.0
        %678 = vmatprep.subr.mxu0 0.0
        %679 = vmatpush2.msra.mxu0 0.0
        %680 = vmatprep.subr.mxu0 0.0
        %681 = vmatpush2.msra.mxu0 0.0
        %682 = vmatprep.mubr.f32.mxu0 0.0
        %683 = vmatmul.mubr.f32.gmra.mxu0 %v595
        %v684 = vpop.f32.mrf.mxu0
        %v685 = vadd.f32 %v592, %v684
        %v686 = vpop.f32.mrf.mxu0
        %687 = vmatprep.mubr.f32.mxu0 0.0
        %688 = vmatmul.mubr.f32.gmra.mxu0 %v598
        %v689 = vpop.f32.mrf.mxu0
        %v690 = vadd.f32 %v592, %v689
        %v691 = vpop.f32.mrf.mxu0
        %692 = vmatprep.mubr.f32.mxu0 0.0
        %693 = vmatmul.mubr.f32.gmra.mxu0 %v601
        %v694 = vpop.f32.mrf.mxu0
        %v695 = vadd.f32 %v592, %v694
        %v696 = vpop.f32.mrf.mxu0
        %697 = vmatprep.mubr.f32.mxu0 0.0
        %698 = vmatmul.mubr.f32.gmra.mxu0 %v604
        %v699 = vpop.f32.mrf.mxu0
        %v700 = vadd.f32 %v592, %v699
        %v701 = vpop.f32.mrf.mxu0
        %702 = vmatprep.mubr.f32.mxu0 0.0
        %703 = vmatmul.mubr.f32.gmra.mxu0 %v607
        %v704 = vpop.f32.mrf.mxu0
        %v705 = vadd.f32 %v592, %v704
        %v706 = vpop.f32.mrf.mxu0
        %707 = vmatprep.mubr.f32.mxu0 0.0
        %708 = vmatmul.mubr.f32.gmra.mxu0 %v610
        %v709 = vpop.f32.mrf.mxu0
        %v710 = vadd.f32 %v592, %v709
        %v711 = vpop.f32.mrf.mxu0
        %712 = vmatprep.mubr.f32.mxu0 0.0
        %713 = vmatmul.mubr.f32.gmra.mxu0 %v613
        %v714 = vpop.f32.mrf.mxu0
        %v715 = vadd.f32 %v592, %v714
        %v716 = vpop.f32.mrf.mxu0
        %717 = vmatprep.mubr.f32.mxu0 0.0
        %718 = vmatmul.mubr.f32.gmra.mxu0 %v616
        %v719 = vpop.f32.mrf.mxu0
        %v720 = vadd.f32 %v592, %v719
        %v721 = vpop.f32.mrf.mxu0
        %722 = vdwg.mxu0
        %v723 = vsub.f32 0.0, %v685
        %v724 = vsub.f32 0.0, %v690
        %v725 = vsub.f32 0.0, %v695
        %v726 = vsub.f32 0.0, %v700
        %v727 = vsub.f32 0.0, %v705
        %v728 = vsub.f32 0.0, %v710
        %v729 = vsub.f32 0.0, %v715
        %v730 = vsub.f32 0.0, %v720
        %v731 = vmul.f32 %v723, 1.442695
        %v732 = vpow.pop %v731
        %v733 = vmul.f32 %v724, 1.442695
        %v734 = vpow.pop %v733
        %v735 = vmul.f32 %v725, 1.442695
        %v736 = vpow.pop %v735
        %v737 = vmul.f32 %v726, 1.442695
        %v738 = vpow.pop %v737
        %v739 = vmul.f32 %v727, 1.442695
        %v740 = vpow.pop %v739
        %v741 = vmul.f32 %v728, 1.442695
        %v742 = vpow.pop %v741
        %v743 = vmul.f32 %v729, 1.442695
        %v744 = vpow.pop %v743
        %v745 = vmul.f32 %v730, 1.442695
        %v746 = vpow.pop %v745
        %v747 = vadd.f32 %v732, 1.0
        %v748 = vadd.f32 %v734, 1.0
        %v749 = vadd.f32 %v736, 1.0
        %v750 = vadd.f32 %v738, 1.0
        %v751 = vadd.f32 %v740, 1.0
        %v752 = vadd.f32 %v742, 1.0
        %v753 = vadd.f32 %v744, 1.0
        %v754 = vadd.f32 %v746, 1.0
        %v755 = vrcp.pop %v747
        %v756 = vmul.f32 1.0, %v755
        %v757 = vrcp.pop %v748
        %v758 = vmul.f32 1.0, %v757
        %v759 = vrcp.pop %v749
        %v760 = vmul.f32 1.0, %v759
        %v761 = vrcp.pop %v750
        %v762 = vmul.f32 1.0, %v761
        %v763 = vrcp.pop %v751
        %v764 = vmul.f32 1.0, %v763
        %v765 = vrcp.pop %v752
        %v766 = vmul.f32 1.0, %v765
        %v767 = vrcp.pop %v753
        %v768 = vmul.f32 1.0, %v767
        %v769 = vrcp.pop %v754
        %v770 = vmul.f32 1.0, %v769
        %vm771 = vcmask 7168
        %772 = vst.msk [vmem:[%s295] sm:$0xff] %vm771, %v756
        %773 = vst.msk [vmem:[%s295 + $0x8] sm:$0xff] %vm771, %v758
        %774 = vst.msk [vmem:[%s295 + $0x10] sm:$0xff] %vm771, %v760
        %775 = vst.msk [vmem:[%s295 + $0x18] sm:$0xff] %vm771, %v762
        %776 = vst.msk [vmem:[%s295 + $0x20] sm:$0xff] %vm771, %v764
        %777 = vst.msk [vmem:[%s295 + $0x28] sm:$0xff] %vm771, %v766
        %778 = vst.msk [vmem:[%s295 + $0x30] sm:$0xff] %vm771, %v768
        %779 = vst.msk [vmem:[%s295 + $0x38] sm:$0xff] %vm771, %v770
        %s780 = sand.u32 %s143, 1
        %s781 = sand.u32 %s143, 1
        %s782 = smul.addr %s781, 64
        %s783 = scalar_lea.vmem [#allocation3], %s782
        %s784 = sand.u32 %s169, 1
        %s785 = sand.u32 %s169, 1
        %s786 = smul.addr %s785, 64
        %s787 = scalar_lea.vmem [#allocation4], %s786
        // Predicated region
        $region41: #{graphsage_forward.5} parent=39 // pred_check
          %p788 = pneg %p153
        $region42: #{graphsage_forward.5} parent=39 // pred_check_branch
          %790 = sbr.rel (%p788) target = $region44
        $region43: #{graphsage_forward.5} parent=39 // pred_region
          %s791 = smul.u32 8, %s20
          %s792 = ssub.s32 30, %s791
          %p793 = scmp.lt.s32.totalorder %s792, 8
          %s794 = scalar_select %p793, %s792, 8
          %s795 = smul.u32 128, %s794
          %p796 = scmp.ne.s32.totalorder 0, %s795
          %s797 = smul.addr %s791, 8
          %s798 = scalar_lea.vmem %s5, %s797
          // Predicated region
          $region45: #{graphsage_forward.5} parent=43 // pred_check
            %p799 = pneg %p796
          $region46: #{graphsage_forward.5} parent=43 // pred_check_branch
            %801 = sbr.rel (%p799) target = $region48
          $region47: #{graphsage_forward.5} parent=43 // pred_region
            // Predicated region
            $region49: #{graphsage_forward.5} parent=47 // pred_check
              _
            $region50: #{graphsage_forward.5} parent=47 // pred_check_branch
              %803 = sbr.rel (0) target = $region52
            $region51: #{graphsage_forward.5} parent=47 // pred_region
              // Predicated region
              $region71: #{graphsage_forward.5} parent=51 // pred_check
                _
              $region72: #{graphsage_forward.5} parent=51 // pred_check_branch
                %867 = sbr.rel (0) target = $region74
              $region73: #{graphsage_forward.5} parent=51 // pred_region
                %s868 = sshrl.u32 %s794, 3
                // While loop
                $region75: #{graphsage_forward.5} parent=73 // loop_pre_header
                  _
                $region76: #{graphsage_forward.5} parent=73 // loop_header
                  %s870 = sphi 0, %s872
                  %p871 = scmp.ge.s32.totalorder %s870, %s868
                  %s875 = sphi 0, %s896
                  %s876 = sphi %s783, %s899
                  %s877 = sphi %s798, %s900
                $region77: #{graphsage_forward.5} parent=73 // loop_header_branch
                  %874 = sbr.rel (%p871) target = $region81
                $region78: #{graphsage_forward.5} parent=73 // loop_body
                  %v878 = vld [vmem:[%s876] sm:$0xff]
                  %879 = vst [vmem:[%s877] sm:$0xff] %v878
                  %v880 = vld [vmem:[%s876 + $0x8] sm:$0xff]
                  %881 = vst [vmem:[%s877 + $0x8] sm:$0xff] %v880
                  %v882 = vld [vmem:[%s876 + $0x10] sm:$0xff]
                  %883 = vst [vmem:[%s877 + $0x10] sm:$0xff] %v882
                  %v884 = vld [vmem:[%s876 + $0x18] sm:$0xff]
                  %885 = vst [vmem:[%s877 + $0x18] sm:$0xff] %v884
                  %v886 = vld [vmem:[%s876 + $0x20] sm:$0xff]
                  %887 = vst [vmem:[%s877 + $0x20] sm:$0xff] %v886
                  %v888 = vld [vmem:[%s876 + $0x28] sm:$0xff]
                  %889 = vst [vmem:[%s877 + $0x28] sm:$0xff] %v888
                  %v890 = vld [vmem:[%s876 + $0x30] sm:$0xff]
                  %891 = vst [vmem:[%s877 + $0x30] sm:$0xff] %v890
                  %v892 = vld [vmem:[%s876 + $0x38] sm:$0xff]
                  %893 = vst [vmem:[%s877 + $0x38] sm:$0xff] %v892
                  %s894 = sadd.s32 1, %s875
                  %p895 = scmp.ge.s32.totalorder %s894, %s868
                  %s896 = scalar_select %p895, 0, %s894
                  %s897 = smul.u32 %s896, 64
                  %s898 = smul.u32 %s896, 64
                  %s899 = scalar_lea.vmem %s783, %s897 [#allocation3]
                  %s900 = scalar_lea.vmem %s798, %s898
                $region79: #{graphsage_forward.5} parent=73 // loop_footer
                  %s872 = sadd.s32 %s870, 1
                $region80: #{graphsage_forward.5} parent=73 // loop_footer_branch
                  %869 = sbr.rel target = $region76
                $region81: #{graphsage_forward.5} parent=73 // loop_exit
                  _
                %s901 = sshrl.u32 %s794, 3
                %s902 = sand.u32 %s794, 7
                %s903 = smul.u32 %s901, 8
                %s904 = smul.u32 8, %s903
                %s905 = scalar_lea.vmem %s783, %s904 [#allocation3]
                %s906 = smul.u32 8, %s903
                %s907 = scalar_lea.vmem %s798, %s906
                // While loop
                $region82: #{graphsage_forward.5} parent=73 // loop_pre_header
                  _
                $region83: #{graphsage_forward.5} parent=73 // loop_header
                  %s909 = sphi 0, %s911
                  %p910 = scmp.ge.s32.totalorder %s909, %s902
                  %s914 = sphi 0, %s921
                  %s915 = sphi %s905, %s924
                  %s916 = sphi %s907, %s925
                $region84: #{graphsage_forward.5} parent=73 // loop_header_branch
                  %913 = sbr.rel (%p910) target = $region88
                $region85: #{graphsage_forward.5} parent=73 // loop_body
                  %v917 = vld [vmem:[%s915] sm:$0xff]
                  %918 = vst [vmem:[%s916] sm:$0xff] %v917
                  %s919 = sadd.s32 1, %s914
                  %p920 = scmp.ge.s32.totalorder %s919, %s902
                  %s921 = scalar_select %p920, 0, %s919
                  %s922 = smul.u32 %s921, 8
                  %s923 = smul.u32 %s921, 8
                  %s924 = scalar_lea.vmem %s905, %s922 [#allocation3]
                  %s925 = scalar_lea.vmem %s907, %s923
                $region86: #{graphsage_forward.5} parent=73 // loop_footer
                  %s911 = sadd.s32 %s909, 1
                $region87: #{graphsage_forward.5} parent=73 // loop_footer_branch
                  %908 = sbr.rel target = $region83
                $region88: #{graphsage_forward.5} parent=73 // loop_exit
                  _
              $region74: #{graphsage_forward.5} parent=51 // pred_fallthru
                _
              // Predicated region
              $region89: #{graphsage_forward.5} parent=51 // pred_check
                _
              $region90: #{graphsage_forward.5} parent=51 // pred_check_branch
                %927 = sbr.rel target = $region92
              $region91: #{graphsage_forward.5} parent=51 // pred_region
                _
              $region92: #{graphsage_forward.5} parent=51 // pred_fallthru
                _
            $region52: #{graphsage_forward.5} parent=47 // pred_fallthru
              _
            // Predicated region
            $region53: #{graphsage_forward.5} parent=47 // pred_check
              _
            $region54: #{graphsage_forward.5} parent=47 // pred_check_branch
              %805 = sbr.rel target = $region56
            $region55: #{graphsage_forward.5} parent=47 // pred_region
              %s807 = ssub.s32 256, 1
              %s808 = sshrl.u32 %s794, 3
              // While loop
              $region57: #{graphsage_forward.5} parent=55 // loop_pre_header
                _
              $region58: #{graphsage_forward.5} parent=55 // loop_header
                %s810 = sphi 0, %s812
                %p811 = scmp.ge.s32.totalorder %s810, %s808
                %s815 = sphi 0, %s836
                %s816 = sphi %s783, %s839
                %s817 = sphi %s798, %s840
              $region59: #{graphsage_forward.5} parent=55 // loop_header_branch
                %814 = sbr.rel (%p811) target = $region63
              $region60: #{graphsage_forward.5} parent=55 // loop_body
                %v818 = vld [vmem:[%s816] sm:%s807]
                %819 = vst [vmem:[%s817] sm:%s807] %v818
                %v820 = vld [vmem:[%s816 + $0x8] sm:%s807]
                %821 = vst [vmem:[%s817 + $0x8] sm:%s807] %v820
                %v822 = vld [vmem:[%s816 + $0x10] sm:%s807]
                %823 = vst [vmem:[%s817 + $0x10] sm:%s807] %v822
                %v824 = vld [vmem:[%s816 + $0x18] sm:%s807]
                %825 = vst [vmem:[%s817 + $0x18] sm:%s807] %v824
                %v826 = vld [vmem:[%s816 + $0x20] sm:%s807]
                %827 = vst [vmem:[%s817 + $0x20] sm:%s807] %v826
                %v828 = vld [vmem:[%s816 + $0x28] sm:%s807]
                %829 = vst [vmem:[%s817 + $0x28] sm:%s807] %v828
                %v830 = vld [vmem:[%s816 + $0x30] sm:%s807]
                %831 = vst [vmem:[%s817 + $0x30] sm:%s807] %v830
                %v832 = vld [vmem:[%s816 + $0x38] sm:%s807]
                %833 = vst [vmem:[%s817 + $0x38] sm:%s807] %v832
                %s834 = sadd.s32 1, %s815
                %p835 = scmp.ge.s32.totalorder %s834, %s808
                %s836 = scalar_select %p835, 0, %s834
                %s837 = smul.u32 %s836, 64
                %s838 = smul.u32 %s836, 64
                %s839 = scalar_lea.vmem %s783, %s837 [#allocation3]
                %s840 = scalar_lea.vmem %s798, %s838
              $region61: #{graphsage_forward.5} parent=55 // loop_footer
                %s812 = sadd.s32 %s810, 1
              $region62: #{graphsage_forward.5} parent=55 // loop_footer_branch
                %809 = sbr.rel target = $region58
              $region63: #{graphsage_forward.5} parent=55 // loop_exit
                _
              %s841 = sshrl.u32 %s794, 3
              %s842 = sand.u32 %s794, 7
              %s843 = smul.u32 %s841, 8
              %s844 = smul.u32 8, %s843
              %s845 = scalar_lea.vmem %s783, %s844 [#allocation3]
              %s846 = smul.u32 8, %s843
              %s847 = scalar_lea.vmem %s798, %s846
              // While loop
              $region64: #{graphsage_forward.5} parent=55 // loop_pre_header
                _
              $region65: #{graphsage_forward.5} parent=55 // loop_header
                %s849 = sphi 0, %s851
                %p850 = scmp.ge.s32.totalorder %s849, %s842
                %s854 = sphi 0, %s861
                %s855 = sphi %s845, %s864
                %s856 = sphi %s847, %s865
              $region66: #{graphsage_forward.5} parent=55 // loop_header_branch
                %853 = sbr.rel (%p850) target = $region70
              $region67: #{graphsage_forward.5} parent=55 // loop_body
                %v857 = vld [vmem:[%s855] sm:%s807]
                %858 = vst [vmem:[%s856] sm:%s807] %v857
                %s859 = sadd.s32 1, %s854
                %p860 = scmp.ge.s32.totalorder %s859, %s842
                %s861 = scalar_select %p860, 0, %s859
                %s862 = smul.u32 %s861, 8
                %s863 = smul.u32 %s861, 8
                %s864 = scalar_lea.vmem %s845, %s862 [#allocation3]
                %s865 = scalar_lea.vmem %s847, %s863
              $region68: #{graphsage_forward.5} parent=55 // loop_footer
                %s851 = sadd.s32 %s849, 1
              $region69: #{graphsage_forward.5} parent=55 // loop_footer_branch
                %848 = sbr.rel target = $region65
              $region70: #{graphsage_forward.5} parent=55 // loop_exit
                _
            $region56: #{graphsage_forward.5} parent=47 // pred_fallthru
              _
          $region48: #{graphsage_forward.5} parent=43 // pred_fallthru
            _
          %928 = vnop
        $region44: #{graphsage_forward.5} parent=39 // pred_fallthru
          _
        // Predicated region
        $region93: #{graphsage_forward.5} parent=39 // pred_check
          %p929 = pneg %p179
        $region94: #{graphsage_forward.5} parent=39 // pred_check_branch
          %931 = sbr.rel (%p929) target = $region96
        $region95: #{graphsage_forward.5} parent=39 // pred_region
          %s932 = smul.u32 8, %s20
          %s933 = ssub.s32 30, %s932
          %p934 = scmp.lt.s32.totalorder %s933, 8
          %s935 = scalar_select %p934, %s933, 8
          %s936 = smul.u32 128, %s935
          %p937 = scmp.ne.s32.totalorder 0, %s936
          %s938 = smul.addr %s932, 8
          %s939 = scalar_lea.vmem %s6, %s938
          // Predicated region
          $region97: #{graphsage_forward.5} parent=95 // pred_check
            %p940 = pneg %p937
          $region98: #{graphsage_forward.5} parent=95 // pred_check_branch
            %942 = sbr.rel (%p940) target = $region100
          $region99: #{graphsage_forward.5} parent=95 // pred_region
            // Predicated region
            $region101: #{graphsage_forward.5} parent=99 // pred_check
              _
            $region102: #{graphsage_forward.5} parent=99 // pred_check_branch
              %944 = sbr.rel (0) target = $region104
            $region103: #{graphsage_forward.5} parent=99 // pred_region
              // Predicated region
              $region123: #{graphsage_forward.5} parent=103 // pred_check
                _
              $region124: #{graphsage_forward.5} parent=103 // pred_check_branch
                %1008 = sbr.rel (0) target = $region126
              $region125: #{graphsage_forward.5} parent=103 // pred_region
                %s1009 = sshrl.u32 %s935, 3
                // While loop
                $region127: #{graphsage_forward.5} parent=125 // loop_pre_header
                  _
                $region128: #{graphsage_forward.5} parent=125 // loop_header
                  %s1011 = sphi 0, %s1013
                  %p1012 = scmp.ge.s32.totalorder %s1011, %s1009
                  %s1016 = sphi 0, %s1037
                  %s1017 = sphi %s787, %s1040
                  %s1018 = sphi %s939, %s1041
                $region129: #{graphsage_forward.5} parent=125 // loop_header_branch
                  %1015 = sbr.rel (%p1012) target = $region133
                $region130: #{graphsage_forward.5} parent=125 // loop_body
                  %v1019 = vld [vmem:[%s1017] sm:$0xff]
                  %1020 = vst [vmem:[%s1018] sm:$0xff] %v1019
                  %v1021 = vld [vmem:[%s1017 + $0x8] sm:$0xff]
                  %1022 = vst [vmem:[%s1018 + $0x8] sm:$0xff] %v1021
                  %v1023 = vld [vmem:[%s1017 + $0x10] sm:$0xff]
                  %1024 = vst [vmem:[%s1018 + $0x10] sm:$0xff] %v1023
                  %v1025 = vld [vmem:[%s1017 + $0x18] sm:$0xff]
                  %1026 = vst [vmem:[%s1018 + $0x18] sm:$0xff] %v1025
                  %v1027 = vld [vmem:[%s1017 + $0x20] sm:$0xff]
                  %1028 = vst [vmem:[%s1018 + $0x20] sm:$0xff] %v1027
                  %v1029 = vld [vmem:[%s1017 + $0x28] sm:$0xff]
                  %1030 = vst [vmem:[%s1018 + $0x28] sm:$0xff] %v1029
                  %v1031 = vld [vmem:[%s1017 + $0x30] sm:$0xff]
                  %1032 = vst [vmem:[%s1018 + $0x30] sm:$0xff] %v1031
                  %v1033 = vld [vmem:[%s1017 + $0x38] sm:$0xff]
                  %1034 = vst [vmem:[%s1018 + $0x38] sm:$0xff] %v1033
                  %s1035 = sadd.s32 1, %s1016
                  %p1036 = scmp.ge.s32.totalorder %s1035, %s1009
                  %s1037 = scalar_select %p1036, 0, %s1035
                  %s1038 = smul.u32 %s1037, 64
                  %s1039 = smul.u32 %s1037, 64
                  %s1040 = scalar_lea.vmem %s787, %s1038 [#allocation4]
                  %s1041 = scalar_lea.vmem %s939, %s1039
                $region131: #{graphsage_forward.5} parent=125 // loop_footer
                  %s1013 = sadd.s32 %s1011, 1
                $region132: #{graphsage_forward.5} parent=125 // loop_footer_branch
                  %1010 = sbr.rel target = $region128
                $region133: #{graphsage_forward.5} parent=125 // loop_exit
                  _
                %s1042 = sshrl.u32 %s935, 3
                %s1043 = sand.u32 %s935, 7
                %s1044 = smul.u32 %s1042, 8
                %s1045 = smul.u32 8, %s1044
                %s1046 = scalar_lea.vmem %s787, %s1045 [#allocation4]
                %s1047 = smul.u32 8, %s1044
                %s1048 = scalar_lea.vmem %s939, %s1047
                // While loop
                $region134: #{graphsage_forward.5} parent=125 // loop_pre_header
                  _
                $region135: #{graphsage_forward.5} parent=125 // loop_header
                  %s1050 = sphi 0, %s1052
                  %p1051 = scmp.ge.s32.totalorder %s1050, %s1043
                  %s1055 = sphi 0, %s1062
                  %s1056 = sphi %s1046, %s1065
                  %s1057 = sphi %s1048, %s1066
                $region136: #{graphsage_forward.5} parent=125 // loop_header_branch
                  %1054 = sbr.rel (%p1051) target = $region140
                $region137: #{graphsage_forward.5} parent=125 // loop_body
                  %v1058 = vld [vmem:[%s1056] sm:$0xff]
                  %1059 = vst [vmem:[%s1057] sm:$0xff] %v1058
                  %s1060 = sadd.s32 1, %s1055
                  %p1061 = scmp.ge.s32.totalorder %s1060, %s1043
                  %s1062 = scalar_select %p1061, 0, %s1060
                  %s1063 = smul.u32 %s1062, 8
                  %s1064 = smul.u32 %s1062, 8
                  %s1065 = scalar_lea.vmem %s1046, %s1063 [#allocation4]
                  %s1066 = scalar_lea.vmem %s1048, %s1064
                $region138: #{graphsage_forward.5} parent=125 // loop_footer
                  %s1052 = sadd.s32 %s1050, 1
                $region139: #{graphsage_forward.5} parent=125 // loop_footer_branch
                  %1049 = sbr.rel target = $region135
                $region140: #{graphsage_forward.5} parent=125 // loop_exit
                  _
              $region126: #{graphsage_forward.5} parent=103 // pred_fallthru
                _
              // Predicated region
              $region141: #{graphsage_forward.5} parent=103 // pred_check
                _
              $region142: #{graphsage_forward.5} parent=103 // pred_check_branch
                %1068 = sbr.rel target = $region144
              $region143: #{graphsage_forward.5} parent=103 // pred_region
                _
              $region144: #{graphsage_forward.5} parent=103 // pred_fallthru
                _
            $region104: #{graphsage_forward.5} parent=99 // pred_fallthru
              _
            // Predicated region
            $region105: #{graphsage_forward.5} parent=99 // pred_check
              _
            $region106: #{graphsage_forward.5} parent=99 // pred_check_branch
              %946 = sbr.rel target = $region108
            $region107: #{graphsage_forward.5} parent=99 // pred_region
              %s948 = ssub.s32 256, 1
              %s949 = sshrl.u32 %s935, 3
              // While loop
              $region109: #{graphsage_forward.5} parent=107 // loop_pre_header
                _
              $region110: #{graphsage_forward.5} parent=107 // loop_header
                %s951 = sphi 0, %s953
                %p952 = scmp.ge.s32.totalorder %s951, %s949
                %s956 = sphi 0, %s977
                %s957 = sphi %s787, %s980
                %s958 = sphi %s939, %s981
              $region111: #{graphsage_forward.5} parent=107 // loop_header_branch
                %955 = sbr.rel (%p952) target = $region115
              $region112: #{graphsage_forward.5} parent=107 // loop_body
                %v959 = vld [vmem:[%s957] sm:%s948]
                %960 = vst [vmem:[%s958] sm:%s948] %v959
                %v961 = vld [vmem:[%s957 + $0x8] sm:%s948]
                %962 = vst [vmem:[%s958 + $0x8] sm:%s948] %v961
                %v963 = vld [vmem:[%s957 + $0x10] sm:%s948]
                %964 = vst [vmem:[%s958 + $0x10] sm:%s948] %v963
                %v965 = vld [vmem:[%s957 + $0x18] sm:%s948]
                %966 = vst [vmem:[%s958 + $0x18] sm:%s948] %v965
                %v967 = vld [vmem:[%s957 + $0x20] sm:%s948]
                %968 = vst [vmem:[%s958 + $0x20] sm:%s948] %v967
                %v969 = vld [vmem:[%s957 + $0x28] sm:%s948]
                %970 = vst [vmem:[%s958 + $0x28] sm:%s948] %v969
                %v971 = vld [vmem:[%s957 + $0x30] sm:%s948]
                %972 = vst [vmem:[%s958 + $0x30] sm:%s948] %v971
                %v973 = vld [vmem:[%s957 + $0x38] sm:%s948]
                %974 = vst [vmem:[%s958 + $0x38] sm:%s948] %v973
                %s975 = sadd.s32 1, %s956
                %p976 = scmp.ge.s32.totalorder %s975, %s949
                %s977 = scalar_select %p976, 0, %s975
                %s978 = smul.u32 %s977, 64
                %s979 = smul.u32 %s977, 64
                %s980 = scalar_lea.vmem %s787, %s978 [#allocation4]
                %s981 = scalar_lea.vmem %s939, %s979
              $region113: #{graphsage_forward.5} parent=107 // loop_footer
                %s953 = sadd.s32 %s951, 1
              $region114: #{graphsage_forward.5} parent=107 // loop_footer_branch
                %950 = sbr.rel target = $region110
              $region115: #{graphsage_forward.5} parent=107 // loop_exit
                _
              %s982 = sshrl.u32 %s935, 3
              %s983 = sand.u32 %s935, 7
              %s984 = smul.u32 %s982, 8
              %s985 = smul.u32 8, %s984
              %s986 = scalar_lea.vmem %s787, %s985 [#allocation4]
              %s987 = smul.u32 8, %s984
              %s988 = scalar_lea.vmem %s939, %s987
              // While loop
              $region116: #{graphsage_forward.5} parent=107 // loop_pre_header
                _
              $region117: #{graphsage_forward.5} parent=107 // loop_header
                %s990 = sphi 0, %s992
                %p991 = scmp.ge.s32.totalorder %s990, %s983
                %s995 = sphi 0, %s1002
                %s996 = sphi %s986, %s1005
                %s997 = sphi %s988, %s1006
              $region118: #{graphsage_forward.5} parent=107 // loop_header_branch
                %994 = sbr.rel (%p991) target = $region122
              $region119: #{graphsage_forward.5} parent=107 // loop_body
                %v998 = vld [vmem:[%s996] sm:%s948]
                %999 = vst [vmem:[%s997] sm:%s948] %v998
                %s1000 = sadd.s32 1, %s995
                %p1001 = scmp.ge.s32.totalorder %s1000, %s983
                %s1002 = scalar_select %p1001, 0, %s1000
                %s1003 = smul.u32 %s1002, 8
                %s1004 = smul.u32 %s1002, 8
                %s1005 = scalar_lea.vmem %s986, %s1003 [#allocation4]
                %s1006 = scalar_lea.vmem %s988, %s1004
              $region120: #{graphsage_forward.5} parent=107 // loop_footer
                %s992 = sadd.s32 %s990, 1
              $region121: #{graphsage_forward.5} parent=107 // loop_footer_branch
                %989 = sbr.rel target = $region117
              $region122: #{graphsage_forward.5} parent=107 // loop_exit
                _
            $region108: #{graphsage_forward.5} parent=99 // pred_fallthru
              _
          $region100: #{graphsage_forward.5} parent=95 // pred_fallthru
            _
          %1069 = vnop
        $region96: #{graphsage_forward.5} parent=39 // pred_fallthru
          _
      $region40: #{graphsage_forward.5} parent=5 // pred_fallthru
        _
      %p1070 = scmp.le.s32.totalorder 2, %s15
      // Predicated region
      $region145: #{graphsage_forward.5} parent=5 // pred_check
        %p1071 = pneg %p1070
      $region146: #{graphsage_forward.5} parent=5 // pred_check_branch
        %1073 = sbr.rel (%p1071) target = $region148
      $region147: #{graphsage_forward.5} parent=5 // pred_region
        %s1074 = ssub.s32 %s15, 2
        // Predicated region
        $region149: #{graphsage_forward.5} parent=147 // pred_check
          %p1075 = pneg %p159
        $region150: #{graphsage_forward.5} parent=147 // pred_check_branch
          %1077 = sbr.rel (%p1075) target = $region152
        $region151: #{graphsage_forward.5} parent=147 // pred_region
          %s1078 = sand.u32 %s144, 1
          %s1079 = sand.u32 %s144, 1
          %s1080 = smul.addr %s1079, 64
          %s1081 = scalar_lea.vmem [#allocation3], %s1080
        $region152: #{graphsage_forward.5} parent=147 // pred_fallthru
          _
        // Predicated region
        $region153: #{graphsage_forward.5} parent=147 // pred_check
          %p1082 = pneg %p185
        $region154: #{graphsage_forward.5} parent=147 // pred_check_branch
          %1084 = sbr.rel (%p1082) target = $region156
        $region155: #{graphsage_forward.5} parent=147 // pred_region
          %s1085 = sand.u32 %s170, 1
          %s1086 = sand.u32 %s170, 1
          %s1087 = smul.addr %s1086, 64
          %s1088 = scalar_lea.vmem [#allocation4], %s1087
        $region156: #{graphsage_forward.5} parent=147 // pred_fallthru
          _
      $region148: #{graphsage_forward.5} parent=5 // pred_fallthru
        _
    $region6: #{graphsage_forward.5} parent=1 // loop_footer
      %s19 = sadd.s32 1, %s15
    $region7: #{graphsage_forward.5} parent=1 // loop_footer_branch
      %14 = sbr.rel target = $region3
    $region8: #{graphsage_forward.5} parent=1 // loop_exit
      _

</llo_original>
